<compile_context>
chip_gen: v7x
topology: tpu7x:2x2x1
jax: 0.10.0
libtpu: 0.0.40
codegen_flags: <defaults>
</compile_context>

<pallas_src>
import jax
import jax.numpy as jnp
from jax.experimental import pallas as pl
from jax.experimental.pallas import tpu as pltpu


def _round_up(v, m):
    return (v + m - 1) // m * m


def _device_kind():
    try:
        return jax.devices()[0].device_kind.lower()
    except Exception:
        return ""


# --------------------------------------------------------------------------- #
# GraphSAGE layer kernel: mean aggregation + fused linear + L2 norm + ReLU.   #
# --------------------------------------------------------------------------- #
def _sage_kernel(adj_ref, xk_ref, xi_ref, inv_ref, wl_ref, wr_ref, b_ref,
                 o_ref, acc_ref):
    """Grid = (row_blocks, k_blocks). Accumulate neighbour sums over k;
    degree-scale + linear + normalize + ReLU epilogue on the last k step."""
    k = pl.program_id(1)

    @pl.when(k == 0)
    def _init():
        acc_ref[...] = jnp.zeros_like(acc_ref)

    # Neighbour-sum accumulation: acc += counts[i,k] @ x[k].
    # int8 counts (half the HBM bytes) are widened to bf16 so the MXU runs
    # bf16 x bf16 with f32 accumulation on every TPU generation.
    a = adj_ref[...].astype(jnp.float32).astype(jnp.bfloat16)
    acc_ref[...] += jnp.dot(a, xk_ref[...], preferred_element_type=jnp.float32)

    @pl.when(k == pl.num_programs(1) - 1)
    def _epilogue():
        # Exact mean: divide the integer-count sums by degree in f32.
        agg = acc_ref[...] * inv_ref[...]
        # Split bf16 matmuls (no f32 concat buffer, no f32 multi-pass MXU).
        h = jnp.dot(agg.astype(jnp.bfloat16), wl_ref[...],
                    preferred_element_type=jnp.float32)
        h = h + jnp.dot(xi_ref[...], wr_ref[...],
                        preferred_element_type=jnp.float32)
        h = h + b_ref[...]
        # Row-wise L2 normalize (F.normalize, eps=1e-12) via rsqrt on the EUP.
        sumsq = jnp.sum(h * h, axis=-1, keepdims=True)
        h = h * jax.lax.rsqrt(jnp.maximum(sumsq, 1e-24))
        # ReLU; dropout is identity in eval mode.
        o_ref[...] = jnp.maximum(h, 0.0).astype(o_ref.dtype)


def build_mean_aggr(edge_index, num_nodes):
    """Dense edge-count matrix (int8, exact) + f32 reciprocal in-degrees."""
    src, dst = edge_index[0], edge_index[1]
    counts = jnp.zeros((num_nodes, num_nodes), jnp.float32).at[dst, src].add(1.0)
    deg = jnp.sum(counts, axis=1, keepdims=True)
    inv_deg = 1.0 / jnp.maximum(deg, 1.0)          # in-degree 0 -> mean = 0
    return counts.astype(jnp.int8), inv_deg


def graphsage_layer(x, adj_counts, inv_deg, w_l, w_r, bias,
                    *, bm_target=512, bk_target=2048):
    """SAGEConv(aggr='mean', normalize=True, bias=True) + ReLU + Dropout(eval)."""
    n, d_in = x.shape
    d_out = w_l.shape[1]
    dp_in = _round_up(d_in, 128)
    dp_out = _round_up(d_out, 128)
    n128 = _round_up(n, 128)

    # ---- Tile selection: large, decoupled row / adjacency-column blocks. ----
    bm = min(_round_up(bm_target, 128), n128)
    if n128 >= 256:                                   # keep >=2 row blocks for 2 TCs
        bm = min(bm, _round_up(n128 // 2, 128))
    bk = min(_round_up(bk_target, 128), n128)

    kind = _device_kind()
    big_vmem = any(t in kind for t in ("v5", "v6"))   # 128 MiB VMEM parts
    cap = (100 << 20) if big_vmem else (48 << 20)     # v7x: 64 MiB physical
    budget = int(cap * 0.8)

    def vmem_bytes(bm_, bk_):
        return (2 * bm_ * bk_ * 1                     # int8 adjacency (x2 buffers)
                + 2 * bk_ * dp_in * 2                 # xk bf16
                + 2 * bm_ * dp_in * 2                 # xi bf16
                + 2 * bm_ * 4                         # 1/deg
                + 2 * 2 * dp_in * dp_out * 2          # W_l + W_r bf16
                + 2 * dp_out * 4                      # bias
                + 2 * bm_ * dp_out * 4                # output tile f32
                + bm_ * dp_in * 4)                    # f32 accumulator scratch

    while vmem_bytes(bm, bk) > budget and bk > 128:
        bk = max(128, _round_up(bk // 2, 128))
    while vmem_bytes(bm, bk) > budget and bm > 128:
        bm = max(128, _round_up(bm // 2, 128))

    n_rows = _round_up(n, bm)
    n_cols = _round_up(n, bk)

    # ---- Lane-dense padding (features -> multiples of 128; rows to blocks). ----
    adj_p = jnp.pad(adj_counts, ((0, n_rows - n), (0, n_cols - n)))
    xk_p = jnp.pad(x, ((0, n_cols - n), (0, dp_in - d_in))).astype(jnp.bfloat16)
    xi_p = jnp.pad(x, ((0, n_rows - n), (0, dp_in - d_in))).astype(jnp.bfloat16)
    inv_p = jnp.pad(inv_deg, ((0, n_rows - n), (0, 0))).astype(jnp.float32)
    wl_p = jnp.pad(w_l, ((0, dp_in - d_in), (0, dp_out - d_out))).astype(jnp.bfloat16)
    wr_p = jnp.pad(w_r, ((0, dp_in - d_in), (0, dp_out - d_out))).astype(jnp.bfloat16)
    b_p = jnp.pad(bias, ((0, 0), (0, dp_out - d_out))).astype(jnp.float32)

    grid = (n_rows // bm, n_cols // bk)
    vmem_limit = int(min(cap, max(int(1.5 * vmem_bytes(bm, bk)), 32 << 20)))

    out = pl.pallas_call(
        _sage_kernel,
        out_shape=jax.ShapeDtypeStruct((n_rows, dp_out), jnp.float32),
        grid=grid,
        in_specs=[
            pl.BlockSpec((bm, bk), lambda i, k: (i, k)),          # int8 edge counts
            pl.BlockSpec((bk, dp_in), lambda i, k: (k, 0)),       # neighbour features
            pl.BlockSpec((bm, dp_in), lambda i, k: (i, 0)),       # self features
            pl.BlockSpec((bm, 1), lambda i, k: (i, 0)),           # 1/deg (f32)
            pl.BlockSpec((dp_in, dp_out), lambda i, k: (0, 0)),   # W_l (bf16)
            pl.BlockSpec((dp_in, dp_out), lambda i, k: (0, 0)),   # W_r (bf16)
            pl.BlockSpec((1, dp_out), lambda i, k: (0, 0)),       # bias (f32)
        ],
        out_specs=pl.BlockSpec((bm, dp_out), lambda i, k: (i, 0)),
        scratch_shapes=[pltpu.VMEM((bm, dp_in), jnp.float32)],
        compiler_params=pltpu.CompilerParams(
            dimension_semantics=("parallel", "arbitrary"),
            vmem_limit_bytes=vmem_limit,
        ),
    )(adj_p, xk_p, xi_p, inv_p, wl_p, wr_p, b_p)

    return out[:n, :d_out]


# --------------------------------------------------------------------------- #
# Classifier head: residual projection + add, Linear -> ReLU -> Linear.       #
# --------------------------------------------------------------------------- #
def _head_kernel(g_ref, x0_ref, wres_ref, bres_ref, w1_ref, b1_ref,
                 w2_ref, b2_ref, o_ref):
    resid = jnp.dot(x0_ref[...], wres_ref[...],
                    preferred_element_type=jnp.float32) + bres_ref[...]
    h = g_ref[...] + resid                              # residual add in f32
    z = jnp.dot(h.astype(jnp.bfloat16), w1_ref[...],
                preferred_element_type=jnp.float32) + b1_ref[...]
    z = jnp.maximum(z, 0.0)                             # ReLU; dropouts = identity
    o_ref[...] = (jnp.dot(z.astype(jnp.bfloat16), w2_ref[...],
                          preferred_element_type=jnp.float32)
                  + b2_ref[...]).astype(o_ref.dtype)


def classifier_head(x_gnn, x0, w_res, b_res, w1, b1, w2, b2, *, bm_target=512):
    n, d_g = x_gnn.shape
    d_in0 = x0.shape[1]
    d_h = w1.shape[1]
    d_c = w2.shape[1]
    dg = _round_up(d_g, 128)
    d0 = _round_up(d_in0, 128)
    dh = _round_up(d_h, 128)
    dc = _round_up(d_c, 128)
    n128 = _round_up(n, 128)

    bm = min(_round_up(bm_target, 128), n128)
    if n128 >= 256:
        bm = min(bm, _round_up(n128 // 2, 128))
    n_rows = _round_up(n, bm)

    g_p = jnp.pad(x_gnn, ((0, n_rows - n), (0, dg - d_g))).astype(jnp.float32)
    x0_p = jnp.pad(x0, ((0, n_rows - n), (0, d0 - d_in0))).astype(jnp.bfloat16)
    wres_p = jnp.pad(w_res, ((0, d0 - d_in0), (0, dg - d_g))).astype(jnp.bfloat16)
    bres_p = jnp.pad(b_res, ((0, 0), (0, dg - d_g))).astype(jnp.float32)
    w1_p = jnp.pad(w1, ((0, dg - d_g), (0, dh - d_h))).astype(jnp.bfloat16)
    b1_p = jnp.pad(b1, ((0, 0), (0, dh - d_h))).astype(jnp.float32)
    w2_p = jnp.pad(w2, ((0, dh - d_h), (0, dc - d_c))).astype(jnp.bfloat16)
    b2_p = jnp.pad(b2, ((0, 0), (0, dc - d_c))).astype(jnp.float32)

    out = pl.pallas_call(
        _head_kernel,
        out_shape=jax.ShapeDtypeStruct((n_rows, dc), jnp.float32),
        grid=(n_rows // bm,),
        in_specs=[
            pl.BlockSpec((bm, dg), lambda i: (i, 0)),     # GNN output (f32)
            pl.BlockSpec((bm, d0), lambda i: (i, 0)),     # original features (bf16)
            pl.BlockSpec((d0, dg), lambda i: (0, 0)),     # W_res
            pl.BlockSpec((1, dg), lambda i: (0, 0)),      # b_res
            pl.BlockSpec((dg, dh), lambda i: (0, 0)),     # W_c1
            pl.BlockSpec((1, dh), lambda i: (0, 0)),      # b_c1
            pl.BlockSpec((dh, dc), lambda i: (0, 0)),     # W_c2
            pl.BlockSpec((1, dc), lambda i: (0, 0)),      # b_c2
        ],
        out_specs=pl.BlockSpec((bm, dc), lambda i: (i, 0)),
        compiler_params=pltpu.CompilerParams(
            dimension_semantics=("parallel",)),
    )(g_p, x0_p, wres_p, bres_p, w1_p, b1_p, w2_p, b2_p)

    return out[:n, :d_c]


# --------------------------------------------------------------------------- #
# Full GNNClassifier forward (graphsage variant, eval mode, batch=None).      #
# --------------------------------------------------------------------------- #
def gnn_classifier_forward(x, edge_index, params):
    n = x.shape[0]
    adj_i8, inv_deg = build_mean_aggr(edge_index, n)
    h = graphsage_layer(x, adj_i8, inv_deg, params["w_l1"], params["w_r1"], params["b1"])
    h = graphsage_layer(h, adj_i8, inv_deg, params["w_l2"], params["w_r2"], params["b2"])
    logits = classifier_head(h, x, params["w_res"], params["b_res"],
                             params["w_c1"], params["b_c1"],
                             params["w_c2"], params["b_c2"])
    return logits


def _reference_forward(x, edge_index, params):
    """Pure-JAX f32 reference with PyTorch-module semantics."""
    n = x.shape[0]
    src, dst = edge_index[0], edge_index[1]
    adj = jnp.zeros((n, n), jnp.float32).at[dst, src].add(1.0)
    deg = jnp.maximum(adj.sum(1, keepdims=True), 1.0)
    adj = adj / deg

    def sage(xin, w_l, w_r, b):
        agg = adj @ xin
        h = agg @ w_l + b + xin @ w_r
        h = h / jnp.maximum(jnp.linalg.norm(h, axis=-1, keepdims=True), 1e-12)
        return jnp.maximum(h, 0.0)

    h = sage(x, params["w_l1"], params["w_r1"], params["b1"])
    h = sage(h, params["w_l2"], params["w_r2"], params["b2"])
    h = h + (x @ params["w_res"] + params["b_res"])
    z = jnp.maximum(h @ params["w_c1"] + params["b_c1"], 0.0)
    return z @ params["w_c2"] + params["b_c2"]


if __name__ == "__main__":
    num_nodes, input_dim = 512, 96
    hidden_dims = [128, 64]
    num_classes = 3
    num_edges = 2048

    key = jax.random.PRNGKey(0)
    keys = jax.random.split(key, 9)

    x = jax.random.normal(keys[0], (num_nodes, input_dim), dtype=jnp.float32)
    edge_index = jax.random.randint(keys[1], (2, num_edges), 0, num_nodes,
                                    dtype=jnp.int32)

    def lin(k, din, dout):
        kw, kb = jax.random.split(k)
        s = (1.0 / din) ** 0.5
        return (s * jax.random.normal(kw, (din, dout), jnp.float32),
                s * jax.random.normal(kb, (1, dout), jnp.float32))

    w_l1, b1 = lin(keys[2], input_dim, hidden_dims[0])
    w_r1, _ = lin(keys[3], input_dim, hidden_dims[0])
    w_l2, b2 = lin(keys[4], hidden_dims[0], hidden_dims[1])
    w_r2, _ = lin(keys[5], hidden_dims[0], hidden_dims[1])
    w_res, b_res = lin(keys[6], input_dim, hidden_dims[1])
    w_c1, b_c1 = lin(keys[7], hidden_dims[1], hidden_dims[1] // 2)
    w_c2, b_c2 = lin(keys[8], hidden_dims[1] // 2, num_classes)

    params = dict(w_l1=w_l1, w_r1=w_r1, b1=b1, w_l2=w_l2, w_r2=w_r2, b2=b2,
                  w_res=w_res, b_res=b_res, w_c1=w_c1, b_c1=b_c1,
                  w_c2=w_c2, b_c2=b_c2)

    logits = gnn_classifier_forward(x, edge_index, params)
    logits = jax.block_until_ready(logits)
    assert logits.shape == (num_nodes, num_classes)

    # Single SAGE-layer check vs the f32 reference (difference is bf16 MXU rounding).
    adj_i8, inv_deg = build_mean_aggr(edge_index, num_nodes)
    layer1 = graphsage_layer(x, adj_i8, inv_deg, w_l1, w_r1, b1)
    adj_f = jnp.zeros((num_nodes, num_nodes), jnp.float32).at[
        edge_index[1], edge_index[0]].add(1.0)
    deg = jnp.maximum(adj_f.sum(1, keepdims=True), 1.0)
    h_ref = (adj_f / deg) @ x @ w_l1 + b1 + x @ w_r1
    h_ref = h_ref / jnp.maximum(jnp.linalg.norm(h_ref, axis=-1, keepdims=True), 1e-12)
    layer1_ref = jnp.maximum(h_ref, 0.0)
    err1 = float(jnp.max(jnp.abs(layer1 - layer1_ref)))
    assert jnp.allclose(layer1, layer1_ref, atol=2e-2, rtol=2e-2), err1

    # Full classifier forward check (2 SAGE layers + residual + MLP head).
    ref = _reference_forward(x, edge_index, params)
    err = float(jnp.max(jnp.abs(logits - ref)))
    assert jnp.allclose(logits, ref, atol=5e-2, rtol=5e-2), err

    print("KERNEL_OK")
</pallas_src>

<mosaic_0001>
module attributes {stable_mosaic.version = 11 : i64} {
  func.func @_sage_kernel(%arg0: i32, %arg1: i32, %arg2: memref<256x512xi8, #tpu.memory_space<vmem>>, %arg3: memref<512x128xbf16, #tpu.memory_space<vmem>>, %arg4: memref<256x128xbf16, #tpu.memory_space<vmem>>, %arg5: memref<256x1xf32, #tpu.memory_space<vmem>>, %arg6: memref<128x128xbf16, #tpu.memory_space<vmem>>, %arg7: memref<128x128xbf16, #tpu.memory_space<vmem>>, %arg8: memref<1x128xf32, #tpu.memory_space<vmem>>, %arg9: memref<256x128xf32, #tpu.memory_space<vmem>>, %arg10: memref<256x128xf32, #tpu.memory_space<vmem>>) attributes {dimension_semantics = [#tpu.dimension_semantics<parallel>, #tpu.dimension_semantics<arbitrary>], iteration_bounds = array<i64: 2, 1>, scalar_prefetch = 0 : i64, scratch_operands = 1 : i64, tpu.core_type = #tpu.core_type<tc>, window_params = [{transform_indices = @transform_0, window_bounds = array<i64: 256, 512>}, {transform_indices = @transform_1, window_bounds = array<i64: 512, 128>}, {transform_indices = @transform_2, window_bounds = array<i64: 256, 128>}, {transform_indices = @transform_3, window_bounds = array<i64: 256, 1>}, {pipeline_mode = #tpu.pipeline_mode<synchronous>, transform_indices = @transform_4, window_bounds = array<i64: 128, 128>}, {pipeline_mode = #tpu.pipeline_mode<synchronous>, transform_indices = @transform_5, window_bounds = array<i64: 128, 128>}, {pipeline_mode = #tpu.pipeline_mode<synchronous>, transform_indices = @transform_6, window_bounds = array<i64: 1, 128>}, {transform_indices = @transform_7, window_bounds = array<i64: 256, 128>}]} {
    %c0_i32 = arith.constant 0 : i32
    %0 = arith.cmpi eq, %arg1, %c0_i32 : i32
    %1 = arith.extui %0 : i1 to i32
    %c0_i32_0 = arith.constant 0 : i32
    %2 = arith.cmpi ne, %1, %c0_i32_0 : i32
    scf.if %2 {
      %cst_10 = arith.constant 0.000000e+00 : f32
      %14 = vector.broadcast %cst_10 : f32 to vector<256x128xf32>
      %c0_11 = arith.constant 0 : index
      %c0_12 = arith.constant 0 : index
      %15 = vector.load %arg10[%c0_11, %c0_12] : memref<256x128xf32, #tpu.memory_space<vmem>>, vector<256x128xf32>
      tpu.vector_store %arg10[%c0_11, %c0_12], %14 {strides = array<i32>} : memref<256x128xf32, #tpu.memory_space<vmem>>, vector<256x128xf32>,
    } else {
    }
    %c0 = arith.constant 0 : index
    %c0_1 = arith.constant 0 : index
    %3 = vector.load %arg2[%c0, %c0_1] : memref<256x512xi8, #tpu.memory_space<vmem>>, vector<256x512xi8>
    %4 = arith.sitofp %3 : vector<256x512xi8> to vector<256x512xf32>
    %5 = arith.truncf %4 : vector<256x512xf32> to vector<256x512xbf16>
    %c0_2 = arith.constant 0 : index
    %c0_3 = arith.constant 0 : index
    %6 = vector.load %arg10[%c0_2, %c0_3] : memref<256x128xf32, #tpu.memory_space<vmem>>, vector<256x128xf32>
    %c0_4 = arith.constant 0 : index
    %c0_5 = arith.constant 0 : index
    %7 = vector.load %arg3[%c0_4, %c0_5] : memref<512x128xbf16, #tpu.memory_space<vmem>>, vector<512x128xbf16>
    %cst = arith.constant dense<0.000000e+00> : vector<256x128xf32>
    %8 = tpu.matmul %5, %7, %cst {dimension_numbers = #tpu.dot_dimension_numbers<[1], [0], [0], [1], [0, 0, 1, 1], [], []>} : vector<256x512xbf16>, vector<512x128xbf16>, vector<256x128xf32> -> vector<256x128xf32>
    %9 = arith.addf %6, %8 : vector<256x128xf32>
    %c0_6 = arith.constant 0 : index
    %c0_7 = arith.constant 0 : index
    %10 = vector.load %arg10[%c0_6, %c0_7] : memref<256x128xf32, #tpu.memory_space<vmem>>, vector<256x128xf32>
    tpu.vector_store %arg10[%c0_6, %c0_7], %9 {strides = array<i32>} : memref<256x128xf32, #tpu.memory_space<vmem>>, vector<256x128xf32>,
    %c0_i32_8 = arith.constant 0 : i32
    %11 = arith.cmpi eq, %arg1, %c0_i32_8 : i32
    %12 = arith.extui %11 : i1 to i32
    %c0_i32_9 = arith.constant 0 : i32
    %13 = arith.cmpi ne, %12, %c0_i32_9 : i32
    scf.if %13 {
      %c0_10 = arith.constant 0 : index
      %c0_11 = arith.constant 0 : index
      %14 = vector.load %arg10[%c0_10, %c0_11] : memref<256x128xf32, #tpu.memory_space<vmem>>, vector<256x128xf32>
      %c0_12 = arith.constant 0 : index
      %c0_13 = arith.constant 0 : index
      %15 = vector.load %arg5[%c0_12, %c0_13] : memref<256x1xf32, #tpu.memory_space<vmem>>, vector<256x1xf32>
      %16 = vector.broadcast %15 : vector<256x1xf32> to vector<256x128xf32>
      %17 = arith.mulf %14, %16 : vector<256x128xf32>
      %18 = arith.truncf %17 : vector<256x128xf32> to vector<256x128xbf16>
      %c0_14 = arith.constant 0 : index
      %c0_15 = arith.constant 0 : index
      %19 = vector.load %arg6[%c0_14, %c0_15] : memref<128x128xbf16, #tpu.memory_space<vmem>>, vector<128x128xbf16>
      %cst_16 = arith.constant dense<0.000000e+00> : vector<256x128xf32>
      %20 = tpu.matmul %18, %19, %cst_16 {dimension_numbers = #tpu.dot_dimension_numbers<[1], [0], [0], [1], [0, 0, 1, 1], [], []>} : vector<256x128xbf16>, vector<128x128xbf16>, vector<256x128xf32> -> vector<256x128xf32>
      %c0_17 = arith.constant 0 : index
      %c0_18 = arith.constant 0 : index
      %21 = vector.load %arg4[%c0_17, %c0_18] : memref<256x128xbf16, #tpu.memory_space<vmem>>, vector<256x128xbf16>
      %c0_19 = arith.constant 0 : index
      %c0_20 = arith.constant 0 : index
      %22 = vector.load %arg7[%c0_19, %c0_20] : memref<128x128xbf16, #tpu.memory_space<vmem>>, vector<128x128xbf16>
      %cst_21 = arith.constant dense<0.000000e+00> : vector<256x128xf32>
      %23 = tpu.matmul %21, %22, %cst_21 {dimension_numbers = #tpu.dot_dimension_numbers<[1], [0], [0], [1], [0, 0, 1, 1], [], []>} : vector<256x128xbf16>, vector<128x128xbf16>, vector<256x128xf32> -> vector<256x128xf32>
      %24 = arith.addf %20, %23 : vector<256x128xf32>
      %c0_22 = arith.constant 0 : index
      %c0_23 = arith.constant 0 : index
      %25 = vector.load %arg8[%c0_22, %c0_23] : memref<1x128xf32, #tpu.memory_space<vmem>>, vector<1x128xf32>
      %26 = vector.broadcast %25 : vector<1x128xf32> to vector<256x128xf32>
      %27 = arith.addf %24, %26 : vector<256x128xf32>
      %28 = arith.mulf %27, %27 : vector<256x128xf32>
      %cst_24 = arith.constant dense<0.000000e+00> : vector<256xf32>
      %29 = vector.multi_reduction <add>, %28, %cst_24 [1] : vector<256x128xf32> to vector<256xf32>
      %30 = vector.shape_cast %29 : vector<256xf32> to vector<256x1xf32>
      %cst_25 = arith.constant 1.000000e-24 : f32
      %31 = vector.broadcast %cst_25 : f32 to vector<256x1xf32>
      %32 = arith.maximumf %30, %31 : vector<256x1xf32>
      %33 = math.rsqrt %32 : vector<256x1xf32>
      %34 = vector.broadcast %33 : vector<256x1xf32> to vector<256x128xf32>
      %35 = arith.mulf %27, %34 : vector<256x128xf32>
      %cst_26 = arith.constant 0.000000e+00 : f32
      %36 = vector.broadcast %cst_26 : f32 to vector<256x128xf32>
      %37 = arith.maximumf %35, %36 : vector<256x128xf32>
      %c0_27 = arith.constant 0 : index
      %c0_28 = arith.constant 0 : index
      %38 = vector.load %arg9[%c0_27, %c0_28] : memref<256x128xf32, #tpu.memory_space<vmem>>, vector<256x128xf32>
      tpu.vector_store %arg9[%c0_27, %c0_28], %37 {strides = array<i32>} : memref<256x128xf32, #tpu.memory_space<vmem>>, vector<256x128xf32>,
    } else {
    }
    return
  }
  func.func @transform_0(%arg0: i32, %arg1: i32) -> (i32, i32) {
    %c0_i32 = arith.constant 0 : i32
    return %arg0, %arg1 : i32, i32
  }
  func.func @transform_1(%arg0: i32, %arg1: i32) -> (i32, i32) {
    %c0_i32 = arith.constant 0 : i32
    %c0_i32_0 = arith.constant 0 : i32
    return %arg1, %c0_i32 : i32, i32
  }
  func.func @transform_2(%arg0: i32, %arg1: i32) -> (i32, i32) {
    %c0_i32 = arith.constant 0 : i32
    %c0_i32_0 = arith.constant 0 : i32
    return %arg0, %c0_i32 : i32, i32
  }
  func.func @transform_3(%arg0: i32, %arg1: i32) -> (i32, i32) {
    %c0_i32 = arith.constant 0 : i32
    %c0_i32_0 = arith.constant 0 : i32
    return %arg0, %c0_i32 : i32, i32
  }
  func.func @transform_4(%arg0: i32, %arg1: i32) -> (i32, i32) {
    %c0_i32 = arith.constant 0 : i32
    %c0_i32_0 = arith.constant 0 : i32
    %c0_i32_1 = arith.constant 0 : i32
    return %c0_i32, %c0_i32_0 : i32, i32
  }
  func.func @transform_5(%arg0: i32, %arg1: i32) -> (i32, i32) {
    %c0_i32 = arith.constant 0 : i32
    %c0_i32_0 = arith.constant 0 : i32
    %c0_i32_1 = arith.constant 0 : i32
    return %c0_i32, %c0_i32_0 : i32, i32
  }
  func.func @transform_6(%arg0: i32, %arg1: i32) -> (i32, i32) {
    %c0_i32 = arith.constant 0 : i32
    %c0_i32_0 = arith.constant 0 : i32
    %c0_i32_1 = arith.constant 0 : i32
    return %c0_i32, %c0_i32_0 : i32, i32
  }
  func.func @transform_7(%arg0: i32, %arg1: i32) -> (i32, i32) {
    %c0_i32 = arith.constant 0 : i32
    %c0_i32_0 = arith.constant 0 : i32
    return %arg0, %c0_i32 : i32, i32
  }
}

</mosaic_0001>

<llo_original>
// kernel: tpu_custom_call.1
$region0: #{tpu_custom_call.1}
  #allocation0 [shape = 'u32[]', space=smem, size = 0x4, offset = 0x4, fixed_abs, tag = 'smem constant byte address 0x4 - core index']
  #allocation1 [shape = 'u32[144,128]{1,0:T(1,128)}', space=vmem, size = 0x12000, scoped, tag = 'internal scratch']
  #allocation2 [shape = 'f32[256,128]{1,0:T(8,128)}', space=vmem, size = 0x20000, scoped, tag = 'scratch operand']
  %s0 = inlined_call_operand.vmem [shape: s8[512,512], index: 0, kind: input, shape index: {}]
  %s1 = inlined_call_operand.hbm [shape: bf16[512,128], index: 1, kind: input, shape index: {}]
  %s2 = inlined_call_operand.hbm [shape: bf16[512,128], index: 2, kind: input, shape index: {}]
  %s3 = inlined_call_operand.vmem [shape: f32[512,1], index: 3, kind: input, shape index: {}]
  %s4 = inlined_call_operand.hbm [shape: bf16[128,128], index: 4, kind: input, shape index: {}]
  %s5 = inlined_call_operand.hbm [shape: bf16[128,128], index: 5, kind: input, shape index: {}]
  %s6 = inlined_call_operand.vmem [shape: f32[1,128], index: 6, kind: input, shape index: {}]
  %s7 = inlined_call_operand.hbm [shape: f32[512,128], index: 7, kind: output, shape index: {}]
  %s8 = sld [smem:[#allocation0]]
  $region85: #{tpu_custom_call.1} parent=0
    _
  %s10 = ssub.s32 1, %s8
  %s11 = scalar_select 0, %s10, %s8
  $region1: #{tpu_custom_call.1} parent=0
    #allocation3 [shape = 'u8[131072]{0}', space=vmem, size = 0x20000, scoped, tag = 'input window, operand 1, single buffered']
    #allocation4 [shape = 's32[2]{0}', space=sflag, size = 0x8, scoped, tag = 'scoped memory for tpu_custom_call.1']
    #allocation5 [shape = 's32[2]{0}', space=sflag, size = 0x8, scoped, tag = 'scoped memory for tpu_custom_call.1']
    #allocation6 [shape = 'u8[131072]{0}', space=vmem, size = 0x20000, scoped, tag = 'input window, operand 2']
    #allocation7 [shape = 's32[2]{0}', space=sflag, size = 0x8, scoped, tag = 'scoped memory for tpu_custom_call.1']
    #allocation8 [shape = 'u8[32768]{0}', space=vmem, size = 0x8000, scoped, tag = 'input window, operand 4, single buffered']
    #allocation9 [shape = 'u8[32768]{0}', space=vmem, size = 0x8000, scoped, tag = 'input window, operand 5, single buffered']
    #allocation10 [shape = 's32[1]{0}', space=sflag, size = 0x4, scoped, tag = 'scoped memory for tpu_custom_call.1']
    #allocation11 [shape = 'u8[262144]{0}', space=vmem, size = 0x40000, scoped, tag = 'output window, operand 0']
    %12 = vsyncpa [#allocation4], 0
    %13 = vsyncpa [#allocation7], 0
    %s14 = scalar_lea.sflag [#allocation7], 1
    %15 = vsyncpa %s14, 0
    %16 = vsyncpa [#allocation10], 0
    %17 = vsyncpa [#allocation5], 0
    %s18 = scalar_lea.sflag [#allocation5], 1
    %19 = vsyncpa %s18, 0
    loop: start=0, step=1, limit=4
    $region2: #{tpu_custom_call.1} parent=1 // loop_pre_header
      _
    $region3: #{tpu_custom_call.1} parent=1 // loop_header
      %s21 = sphi 0, %s25
      %p22 = scmp.ge.s32.totalorder %s21, 4
      %s28 = sphi 0, %s40
      %s29 = sphi 0, %s36
      %s30 = sphi 0, %s28
      %s31 = sphi 0, %s29
      %s32 = sphi 0, %s30
      %s33 = sphi 0, %s31
      %s45 = sphi 0, %s47
      %s48 = sphi 0, %s45
      %s49 = sphi 0, %s48
      %s65 = sphi 0, %s49
      %s71 = sphi 0, %s73
      %s74 = sphi 0, %s71
      %s75 = sphi 0, %s74
      %s91 = sphi 0, %s75
      %s97 = sphi 0, %s99
      %s100 = sphi 0, %s97
      %s101 = sphi 0, %s100
      %s117 = sphi 0, %s101
      %s123 = sphi 0, %s125
      %s126 = sphi 0, %s123
      %s127 = sphi 0, %s126
      %s143 = sphi 0, %s127
      %s147 = sphi 0, %s147
      %s149 = sphi 0, %s147
      %s150 = sphi 0, %s149
      %s164 = sphi 0, %s150
      %s168 = sphi 0, %s168
      %s170 = sphi 0, %s168
      %s171 = sphi 0, %s170
      %s185 = sphi 0, %s171
      %s189 = sphi 0, %s189
      %s191 = sphi 0, %s189
      %s192 = sphi 0, %s191
      %s206 = sphi 0, %s192
      %s212 = sphi 0, %s214
      %s215 = sphi 0, %s212
      %s216 = sphi 0, %s215
      %s232 = sphi 0, %s216
    $region4: #{tpu_custom_call.1} parent=1 // loop_header_branch
      %24 = sbr.rel (%p22) target = $region8
    $region5: #{tpu_custom_call.1} parent=1 // loop_body
      %s26 = ssub.s32 %s21, 1
      %s27 = ssub.s32 %s21, 2
      %s34 = sadd.s32 1, %s29
      %p35 = scmp.ge.s32.totalorder %s34, 1
      %s36 = scalar_select %p35, 0, %s34
      %s37 = sadd.s32 1, %s28
      %s38 = scalar_select %p35, %s37, %s28
      %p39 = scmp.ge.s32.totalorder %s38, 2
      %s40 = scalar_select %p39, 0, %s38
      %s41 = ssub.s32 %s28, %s40
      %s42 = ssub.s32 %s29, %s36
      %s43 = sor.u32 %s41, %s42
      %p44 = scmp.eq.s32.totalorder %s43, 0
      %s46 = sadd.s32 %s45, 1
      %s47 = scalar_select %p44, %s45, %s46
      %p50 = pneg %p44
      %p51 = scmp.eq.s32.totalorder %s21, 1
      %p52 = por %p50, %p51
      %p53 = scmp.ne.s32.totalorder %s45, %s48
      %p54 = scmp.eq.s32.totalorder %s21, 0
      %p55 = por %p53, %p54
      %p56 = scmp.ne.s32.totalorder %s45, %s48
      %p57 = scmp.eq.s32.totalorder %s26, 1
      %p58 = por %p56, %p57
      %p59 = scmp.ne.s32.totalorder %s48, %s49
      %p60 = scmp.eq.s32.totalorder %s26, 0
      %p61 = por %p59, %p60
      %p62 = scmp.ne.s32.totalorder %s48, %s49
      %p63 = scmp.eq.s32.totalorder %s27, 1
      %p64 = por %p62, %p63
      %p66 = scmp.ne.s32.totalorder %s49, %s65
      %p67 = scmp.eq.s32.totalorder %s27, 0
      %p68 = por %p66, %p67
      %s69 = ssub.s32 %s29, %s36
      %p70 = scmp.eq.s32.totalorder %s69, 0
      %s72 = sadd.s32 %s71, 1
      %s73 = scalar_select %p70, %s71, %s72
      %p76 = pneg %p70
      %p77 = scmp.eq.s32.totalorder %s21, 1
      %p78 = por %p76, %p77
      %p79 = scmp.ne.s32.totalorder %s71, %s74
      %p80 = scmp.eq.s32.totalorder %s21, 0
      %p81 = por %p79, %p80
      %p82 = scmp.ne.s32.totalorder %s71, %s74
      %p83 = scmp.eq.s32.totalorder %s26, 1
      %p84 = por %p82, %p83
      %p85 = scmp.ne.s32.totalorder %s74, %s75
      %p86 = scmp.eq.s32.totalorder %s26, 0
      %p87 = por %p85, %p86
      %p88 = scmp.ne.s32.totalorder %s74, %s75
      %p89 = scmp.eq.s32.totalorder %s27, 1
      %p90 = por %p88, %p89
      %p92 = scmp.ne.s32.totalorder %s75, %s91
      %p93 = scmp.eq.s32.totalorder %s27, 0
      %p94 = por %p92, %p93
      %s95 = ssub.s32 %s28, %s40
      %p96 = scmp.eq.s32.totalorder %s95, 0
      %s98 = sadd.s32 %s97, 1
      %s99 = scalar_select %p96, %s97, %s98
      %p102 = pneg %p96
      %p103 = scmp.eq.s32.totalorder %s21, 1
      %p104 = por %p102, %p103
      %p105 = scmp.ne.s32.totalorder %s97, %s100
      %p106 = scmp.eq.s32.totalorder %s21, 0
      %p107 = por %p105, %p106
      %p108 = scmp.ne.s32.totalorder %s97, %s100
      %p109 = scmp.eq.s32.totalorder %s26, 1
      %p110 = por %p108, %p109
      %p111 = scmp.ne.s32.totalorder %s100, %s101
      %p112 = scmp.eq.s32.totalorder %s26, 0
      %p113 = por %p111, %p112
      %p114 = scmp.ne.s32.totalorder %s100, %s101
      %p115 = scmp.eq.s32.totalorder %s27, 1
      %p116 = por %p114, %p115
      %p118 = scmp.ne.s32.totalorder %s101, %s117
      %p119 = scmp.eq.s32.totalorder %s27, 0
      %p120 = por %p118, %p119
      %s121 = ssub.s32 %s28, %s40
      %p122 = scmp.eq.s32.totalorder %s121, 0
      %s124 = sadd.s32 %s123, 1
      %s125 = scalar_select %p122, %s123, %s124
      %p128 = pneg %p122
      %p129 = scmp.eq.s32.totalorder %s21, 1
      %p130 = por %p128, %p129
      %p131 = scmp.ne.s32.totalorder %s123, %s126
      %p132 = scmp.eq.s32.totalorder %s21, 0
      %p133 = por %p131, %p132
      %p134 = scmp.ne.s32.totalorder %s123, %s126
      %p135 = scmp.eq.s32.totalorder %s26, 1
      %p136 = por %p134, %p135
      %p137 = scmp.ne.s32.totalorder %s126, %s127
      %p138 = scmp.eq.s32.totalorder %s26, 0
      %p139 = por %p137, %p138
      %p140 = scmp.ne.s32.totalorder %s126, %s127
      %p141 = scmp.eq.s32.totalorder %s27, 1
      %p142 = por %p140, %p141
      %p144 = scmp.ne.s32.totalorder %s127, %s143
      %p145 = scmp.eq.s32.totalorder %s27, 0
      %p146 = por %p144, %p145
      %s148 = sadd.s32 %s147, 1
      %p151 = scmp.eq.s32.totalorder %s21, 1
      %p152 = scmp.ne.s32.totalorder %s147, %s149
      %p153 = scmp.eq.s32.totalorder %s21, 0
      %p154 = por %p152, %p153
      %p155 = scmp.ne.s32.totalorder %s147, %s149
      %p156 = scmp.eq.s32.totalorder %s26, 1
      %p157 = por %p155, %p156
      %p158 = scmp.ne.s32.totalorder %s149, %s150
      %p159 = scmp.eq.s32.totalorder %s26, 0
      %p160 = por %p158, %p159
      %p161 = scmp.ne.s32.totalorder %s149, %s150
      %p162 = scmp.eq.s32.totalorder %s27, 1
      %p163 = por %p161, %p162
      %p165 = scmp.ne.s32.totalorder %s150, %s164
      %p166 = scmp.eq.s32.totalorder %s27, 0
      %p167 = por %p165, %p166
      %s169 = sadd.s32 %s168, 1
      %p172 = scmp.eq.s32.totalorder %s21, 1
      %p173 = scmp.ne.s32.totalorder %s168, %s170
      %p174 = scmp.eq.s32.totalorder %s21, 0
      %p175 = por %p173, %p174
      %p176 = scmp.ne.s32.totalorder %s168, %s170
      %p177 = scmp.eq.s32.totalorder %s26, 1
      %p178 = por %p176, %p177
      %p179 = scmp.ne.s32.totalorder %s170, %s171
      %p180 = scmp.eq.s32.totalorder %s26, 0
      %p181 = por %p179, %p180
      %p182 = scmp.ne.s32.totalorder %s170, %s171
      %p183 = scmp.eq.s32.totalorder %s27, 1
      %p184 = por %p182, %p183
      %p186 = scmp.ne.s32.totalorder %s171, %s185
      %p187 = scmp.eq.s32.totalorder %s27, 0
      %p188 = por %p186, %p187
      %s190 = sadd.s32 %s189, 1
      %p193 = scmp.eq.s32.totalorder %s21, 1
      %p194 = scmp.ne.s32.totalorder %s189, %s191
      %p195 = scmp.eq.s32.totalorder %s21, 0
      %p196 = por %p194, %p195
      %p197 = scmp.ne.s32.totalorder %s189, %s191
      %p198 = scmp.eq.s32.totalorder %s26, 1
      %p199 = por %p197, %p198
      %p200 = scmp.ne.s32.totalorder %s191, %s192
      %p201 = scmp.eq.s32.totalorder %s26, 0
      %p202 = por %p200, %p201
      %p203 = scmp.ne.s32.totalorder %s191, %s192
      %p204 = scmp.eq.s32.totalorder %s27, 1
      %p205 = por %p203, %p204
      %p207 = scmp.ne.s32.totalorder %s192, %s206
      %p208 = scmp.eq.s32.totalorder %s27, 0
      %p209 = por %p207, %p208
      %s210 = ssub.s32 %s28, %s40
      %p211 = scmp.eq.s32.totalorder %s210, 0
      %s213 = sadd.s32 %s212, 1
      %s214 = scalar_select %p211, %s212, %s213
      %p217 = pneg %p211
      %p218 = scmp.eq.s32.totalorder %s21, 1
      %p219 = por %p217, %p218
      %p220 = scmp.ne.s32.totalorder %s212, %s215
      %p221 = scmp.eq.s32.totalorder %s21, 0
      %p222 = por %p220, %p221
      %p223 = scmp.ne.s32.totalorder %s212, %s215
      %p224 = scmp.eq.s32.totalorder %s26, 1
      %p225 = por %p223, %p224
      %p226 = scmp.ne.s32.totalorder %s215, %s216
      %p227 = scmp.eq.s32.totalorder %s26, 0
      %p228 = por %p226, %p227
      %p229 = scmp.ne.s32.totalorder %s215, %s216
      %p230 = scmp.eq.s32.totalorder %s27, 1
      %p231 = por %p229, %p230
      %p233 = scmp.ne.s32.totalorder %s216, %s232
      %p234 = scmp.eq.s32.totalorder %s27, 0
      %p235 = por %p233, %p234
      %p236 = scmp.le.s32.totalorder 1, %s21
      %p237 = scmp.lt.s32.totalorder %s21, 3
      %p238 = pnand %p236, %p237
      %p239 = pneg %p238
      // Predicated region
      $region9: #{tpu_custom_call.1} parent=5 // pred_check
        _
      $region10: #{tpu_custom_call.1} parent=5 // pred_check_branch
        %241 = sbr.rel (%p238) target = $region12
      $region11: #{tpu_custom_call.1} parent=5 // pred_region
        %s242 = ssub.s32 %s21, 1
        // Predicated region
        $region13: #{tpu_custom_call.1} parent=11 // pred_check
          %p243 = pneg %p87
        $region14: #{tpu_custom_call.1} parent=11 // pred_check_branch
          %245 = sbr.rel (%p243) target = $region16
        $region15: #{tpu_custom_call.1} parent=11 // pred_region
          %s246 = smul.u32 64, %s31
          %s248 = ssub.s32 4096, 4096
          %249 = vsyncadd [#allocation4], %s248
          %s250 = smul.addr %s246, 64
          %s251 = scalar_lea.hbm %s1, %s250
          %s252 = sshll.u32 [#allocation3], 4
          %s253 = int_to_ptr.vmem [resolvable:$true] %s252
          %258 = dma.hbm_to_vmem [thread:$0]  %s251, 4096, %s253, [#allocation4], 64, 64, 4
        $region16: #{tpu_custom_call.1} parent=11 // pred_fallthru
          _
        // Predicated region
        $region17: #{tpu_custom_call.1} parent=11 // pred_check
          %p259 = pneg %p160
        $region18: #{tpu_custom_call.1} parent=11 // pred_check_branch
          %261 = sbr.rel (%p259) target = $region20
        $region19: #{tpu_custom_call.1} parent=11 // pred_region
          %s263 = ssub.s32 1024, 1024
          %264 = vsyncadd [#allocation7], %s263
          %s265 = sshll.u32 [#allocation8], 4
          %s266 = int_to_ptr.vmem [resolvable:$true] %s265
          %271 = dma.hbm_to_vmem [thread:$0]  %s4, 1024, %s266, [#allocation7], 64, 64, 4
        $region20: #{tpu_custom_call.1} parent=11 // pred_fallthru
          _
        // Predicated region
        $region21: #{tpu_custom_call.1} parent=11 // pred_check
          %p272 = pneg %p181
        $region22: #{tpu_custom_call.1} parent=11 // pred_check_branch
          %274 = sbr.rel (%p272) target = $region24
        $region23: #{tpu_custom_call.1} parent=11 // pred_region
          %s276 = ssub.s32 1024, 1024
          %277 = vsyncadd [#allocation10], %s276
          %s278 = sshll.u32 [#allocation9], 4
          %s279 = int_to_ptr.vmem [resolvable:$true] %s278
          %284 = dma.hbm_to_vmem [thread:$0]  %s5, 1024, %s279, [#allocation10], 64, 64, 4
        $region24: #{tpu_custom_call.1} parent=11 // pred_fallthru
          _
        // Predicated region
        $region25: #{tpu_custom_call.1} parent=11 // pred_check
          %p285 = pneg %p202
        $region26: #{tpu_custom_call.1} parent=11 // pred_check_branch
          %287 = sbr.rel (%p285) target = $region28
        $region27: #{tpu_custom_call.1} parent=11 // pred_region
          _
        $region28: #{tpu_custom_call.1} parent=11 // pred_fallthru
          _
      $region12: #{tpu_custom_call.1} parent=5 // pred_fallthru
        _
      %p288 = scmp.lt.s32.totalorder %s21, 2
      // Predicated region
      $region29: #{tpu_custom_call.1} parent=5 // pred_check
        %p289 = pneg %p288
      $region30: #{tpu_custom_call.1} parent=5 // pred_check_branch
        %291 = sbr.rel (%p289) target = $region32
      $region31: #{tpu_custom_call.1} parent=5 // pred_region
        // Predicated region
        $region33: #{tpu_custom_call.1} parent=31 // pred_check
          %p292 = pneg %p55
        $region34: #{tpu_custom_call.1} parent=31 // pred_check_branch
          %294 = sbr.rel (%p292) target = $region36
        $region35: #{tpu_custom_call.1} parent=31 // pred_region
          %s295 = smul.u32 8, %s28
          %s296 = smul.u32 4, %s29
          %p297 = scmp.lt.s32.totalorder %s295, 15
          %s298 = scalar_select %p297, %s295, 15
          %p299 = scmp.lt.s32.totalorder %s296, 3
          %s300 = scalar_select %p299, %s296, 3
          %s301 = smul.addr %s298, 4
          %s302 = sadd.s32 %s300, %s301
          %s303 = smul.addr %s302, 8
          %s304 = scalar_lea.vmem %s0, %s303
          %s305 = smul.u32 8, %s28
          %s306 = smul.u32 4, %s29
        $region36: #{tpu_custom_call.1} parent=31 // pred_fallthru
          _
        // Predicated region
        $region37: #{tpu_custom_call.1} parent=31 // pred_check
          %p307 = pneg %p107
        $region38: #{tpu_custom_call.1} parent=31 // pred_check_branch
          %309 = sbr.rel (%p307) target = $region40
        $region39: #{tpu_custom_call.1} parent=31 // pred_region
          %s310 = sand.u32 %s21, 1
          %s311 = scalar_lea.sflag [#allocation7], %s310
          %s312 = sand.u32 %s97, 1
          %s313 = smul.addr %s312, 128
          %s314 = scalar_lea.vmem [#allocation6], %s313
          %s315 = smul.u32 32, %s28
          %s317 = ssub.s32 2048, 2048
          %318 = vsyncadd %s311, %s317
          %s319 = smul.addr %s315, 64
          %s320 = scalar_lea.hbm %s2, %s319
          %s321 = sshll.u32 %s314, 4
          %s322 = int_to_ptr.vmem [resolvable:$true] %s321
          %327 = dma.hbm_to_vmem [thread:$0]  %s320, 2048, %s322, %s311, 64, 64, 4
        $region40: #{tpu_custom_call.1} parent=31 // pred_fallthru
          _
        // Predicated region
        $region41: #{tpu_custom_call.1} parent=31 // pred_check
          %p328 = pneg %p133
        $region42: #{tpu_custom_call.1} parent=31 // pred_check_branch
          %330 = sbr.rel (%p328) target = $region44
        $region43: #{tpu_custom_call.1} parent=31 // pred_region
          %s331 = smul.u32 32, %s28
          %p332 = scmp.lt.s32.totalorder %s331, 63
          %s333 = scalar_select %p332, %s331, 63
          %s334 = smul.addr %s333, 8
          %s335 = scalar_lea.vmem %s3, %s334
          %s336 = smul.u32 32, %s28
        $region44: #{tpu_custom_call.1} parent=31 // pred_fallthru
          _
      $region32: #{tpu_custom_call.1} parent=5 // pred_fallthru
        _
      %p337 = scmp.le.s32.totalorder 1, %s21
      %p338 = scmp.lt.s32.totalorder %s21, 3
      %p339 = pnand %p337, %p338
      %p340 = pneg %p339
      // Predicated region
      $region45: #{tpu_custom_call.1} parent=5 // pred_check
        _
      $region46: #{tpu_custom_call.1} parent=5 // pred_check_branch
        %342 = sbr.rel (%p339) target = $region48
      $region47: #{tpu_custom_call.1} parent=5 // pred_region
        %s343 = ssub.s32 %s21, 1
        // Predicated region
        $region49: #{tpu_custom_call.1} parent=47 // pred_check
          %p344 = pneg %p87
        $region50: #{tpu_custom_call.1} parent=47 // pred_check_branch
          %346 = sbr.rel (%p344) target = $region52
        $region51: #{tpu_custom_call.1} parent=47 // pred_region
          %347 = dma.done [#allocation4], 4096
        $region52: #{tpu_custom_call.1} parent=47 // pred_fallthru
          _
        %s348 = sand.u32 %s26, 1
        %s349 = scalar_lea.sflag [#allocation7], %s348
        %s350 = sand.u32 %s100, 1
        %s351 = smul.addr %s350, 128
        %s352 = scalar_lea.vmem [#allocation6], %s351
        // Predicated region
        $region53: #{tpu_custom_call.1} parent=47 // pred_check
          %p353 = pneg %p113
        $region54: #{tpu_custom_call.1} parent=47 // pred_check_branch
          %355 = sbr.rel (%p353) target = $region56
        $region55: #{tpu_custom_call.1} parent=47 // pred_region
          %356 = dma.done %s349, 2048
        $region56: #{tpu_custom_call.1} parent=47 // pred_fallthru
          _
        // Predicated region
        $region57: #{tpu_custom_call.1} parent=47 // pred_check
          %p357 = pneg %p160
        $region58: #{tpu_custom_call.1} parent=47 // pred_check_branch
          %359 = sbr.rel (%p357) target = $region60
        $region59: #{tpu_custom_call.1} parent=47 // pred_region
          %360 = dma.done [#allocation7], 1024
        $region60: #{tpu_custom_call.1} parent=47 // pred_fallthru
          _
        // Predicated region
        $region61: #{tpu_custom_call.1} parent=47 // pred_check
          %p361 = pneg %p181
        $region62: #{tpu_custom_call.1} parent=47 // pred_check_branch
          %363 = sbr.rel (%p361) target = $region64
        $region63: #{tpu_custom_call.1} parent=47 // pred_region
          %364 = dma.done [#allocation10], 1024
        $region64: #{tpu_custom_call.1} parent=47 // pred_fallthru
          _
        %s365 = smul.u32 8, %s30
        %s366 = smul.u32 4, %s31
        %p367 = scmp.lt.s32.totalorder %s365, 15
        %s368 = scalar_select %p367, %s365, 15
        %p369 = scmp.lt.s32.totalorder %s366, 3
        %s370 = scalar_select %p369, %s366, 3
        %s371 = smul.addr %s368, 4
        %s372 = sadd.s32 %s370, %s371
        %s373 = smul.addr %s372, 8
        %s374 = scalar_lea.vmem %s0, %s373
        %p375 = pneg %p61
        %p376 = pneg %p58
        %p377 = pneg %p87
        %p378 = pneg %p84
        %s379 = sand.u32 %s26, 1
        %s380 = scalar_lea.sflag [#allocation7], %s379
        %s381 = sand.u32 %s100, 1
        %s382 = smul.addr %s381, 128
        %s383 = scalar_lea.vmem [#allocation6], %s382
        %p384 = pneg %p113
        %p385 = pneg %p110
        %s386 = smul.u32 32, %s30
        %p387 = scmp.lt.s32.totalorder %s386, 63
        %s388 = scalar_select %p387, %s386, 63
        %s389 = smul.addr %s388, 8
        %s390 = scalar_lea.vmem %s3, %s389
        %p391 = pneg %p139
        %p392 = pneg %p136
        %p393 = pneg %p160
        %p394 = pneg %p157
        %p395 = pneg %p181
        %p396 = pneg %p178
        %p397 = pneg %p202
        %p398 = pneg %p199
        %p399 = pneg %p228
        %p400 = pneg %p225
        %s401 = sand.u32 %s215, 1
        %s402 = scalar_lea.sflag [#allocation5], %s401
        %s403 = sand.u32 %s215, 1
        %s404 = smul.addr %s403, 256
        %s405 = scalar_lea.vmem [#allocation11], %s404
        %s406 = smul.u32 8, %s30
        %s407 = smul.u32 4, %s31
        %p408 = scmp.lt.s32.totalorder %s406, 15
        %s409 = scalar_select %p408, %s406, 15
        %p410 = scmp.lt.s32.totalorder %s407, 3
        %s411 = scalar_select %p410, %s407, 3
        %s412 = smul.addr %s409, 4
        %s413 = sadd.s32 %s411, %s412
        %s414 = smul.addr %s413, 8
        %s415 = scalar_lea.vmem %s0, %s414
        %s416 = smul.u32 8, %s30
        %s417 = smul.u32 4, %s31
        %s418 = smul.u32 64, %s31
        %s419 = smul.u32 32, %s30
        %s420 = smul.u32 32, %s30
        %p421 = scmp.lt.s32.totalorder %s420, 63
        %s422 = scalar_select %p421, %s420, 63
        %s423 = smul.addr %s422, 8
        %s424 = scalar_lea.vmem %s3, %s423
        %s425 = smul.u32 32, %s30
        %s426 = smul.u32 32, %s30
        %p428 = scmp.eq.s32.totalorder %s31, 0
        // Predicated region
        $region65: #{tpu_custom_call.1} parent=47 // pred_check
          %p429 = pneg %p428
        $region66: #{tpu_custom_call.1} parent=47 // pred_check_branch
          %431 = sbr.rel (%p429) target = $region68
        $region67: #{tpu_custom_call.1} parent=47 // pred_region
          %432 = vst [vmem:[#allocation2] sm:$0xff] 0.0
          %433 = vst [vmem:[#allocation2 + $0x8] sm:$0xff] 0.0
          %434 = vst [vmem:[#allocation2 + $0x10] sm:$0xff] 0.0
          %435 = vst [vmem:[#allocation2 + $0x18] sm:$0xff] 0.0
          %436 = vst [vmem:[#allocation2 + $0x20] sm:$0xff] 0.0
          %437 = vst [vmem:[#allocation2 + $0x28] sm:$0xff] 0.0
          %438 = vst [vmem:[#allocation2 + $0x30] sm:$0xff] 0.0
          %439 = vst [vmem:[#allocation2 + $0x38] sm:$0xff] 0.0
          %440 = vst [vmem:[#allocation2 + $0x40] sm:$0xff] 0.0
          %441 = vst [vmem:[#allocation2 + $0x48] sm:$0xff] 0.0
          %442 = vst [vmem:[#allocation2 + $0x50] sm:$0xff] 0.0
          %443 = vst [vmem:[#allocation2 + $0x58] sm:$0xff] 0.0
          %444 = vst [vmem:[#allocation2 + $0x60] sm:$0xff] 0.0
          %445 = vst [vmem:[#allocation2 + $0x68] sm:$0xff] 0.0
          %446 = vst [vmem:[#allocation2 + $0x70] sm:$0xff] 0.0
          %447 = vst [vmem:[#allocation2 + $0x78] sm:$0xff] 0.0
          %448 = vst [vmem:[#allocation2 + $0x80] sm:$0xff] 0.0
          %449 = vst [vmem:[#allocation2 + $0x88] sm:$0xff] 0.0
          %450 = vst [vmem:[#allocation2 + $0x90] sm:$0xff] 0.0
          %451 = vst [vmem:[#allocation2 + $0x98] sm:$0xff] 0.0
          %452 = vst [vmem:[#allocation2 + $0xa0] sm:$0xff] 0.0
          %453 = vst [vmem:[#allocation2 + $0xa8] sm:$0xff] 0.0
          %454 = vst [vmem:[#allocation2 + $0xb0] sm:$0xff] 0.0
          %455 = vst [vmem:[#allocation2 + $0xb8] sm:$0xff] 0.0
          %456 = vst [vmem:[#allocation2 + $0xc0] sm:$0xff] 0.0
          %457 = vst [vmem:[#allocation2 + $0xc8] sm:$0xff] 0.0
          %458 = vst [vmem:[#allocation2 + $0xd0] sm:$0xff] 0.0
          %459 = vst [vmem:[#allocation2 + $0xd8] sm:$0xff] 0.0
          %460 = vst [vmem:[#allocation2 + $0xe0] sm:$0xff] 0.0
          %461 = vst [vmem:[#allocation2 + $0xe8] sm:$0xff] 0.0
          %462 = vst [vmem:[#allocation2 + $0xf0] sm:$0xff] 0.0
          %463 = vst [vmem:[#allocation2 + $0xf8] sm:$0xff] 0.0
        $region68: #{tpu_custom_call.1} parent=47 // pred_fallthru
          _
        %v464 = vld [vmem:[%s415] sm:$0xff]
        %v465 = vld [vmem:[%s415 + $0x8] sm:$0xff]
        %v466 = vld [vmem:[%s415 + $0x10] sm:$0xff]
        %v467 = vld [vmem:[%s415 + $0x18] sm:$0xff]
        %v468 = vld [vmem:[%s415 + $0x20] sm:$0xff]
        %v469 = vld [vmem:[%s415 + $0x28] sm:$0xff]
        %v470 = vld [vmem:[%s415 + $0x30] sm:$0xff]
        %v471 = vld [vmem:[%s415 + $0x38] sm:$0xff]
        %v472 = vld [vmem:[%s415 + $0x40] sm:$0xff]
        %v473 = vld [vmem:[%s415 + $0x48] sm:$0xff]
        %v474 = vld [vmem:[%s415 + $0x50] sm:$0xff]
        %v475 = vld [vmem:[%s415 + $0x58] sm:$0xff]
        %v476 = vld [vmem:[%s415 + $0x60] sm:$0xff]
        %v477 = vld [vmem:[%s415 + $0x68] sm:$0xff]
        %v478 = vld [vmem:[%s415 + $0x70] sm:$0xff]
        %v479 = vld [vmem:[%s415 + $0x78] sm:$0xff]
        %v480 = vld [vmem:[%s415 + $0x80] sm:$0xff]
        %v481 = vld [vmem:[%s415 + $0x88] sm:$0xff]
        %v482 = vld [vmem:[%s415 + $0x90] sm:$0xff]
        %v483 = vld [vmem:[%s415 + $0x98] sm:$0xff]
        %v484 = vld [vmem:[%s415 + $0xa0] sm:$0xff]
        %v485 = vld [vmem:[%s415 + $0xa8] sm:$0xff]
        %v486 = vld [vmem:[%s415 + $0xb0] sm:$0xff]
        %v487 = vld [vmem:[%s415 + $0xb8] sm:$0xff]
        %v488 = vld [vmem:[%s415 + $0xc0] sm:$0xff]
        %v489 = vld [vmem:[%s415 + $0xc8] sm:$0xff]
        %v490 = vld [vmem:[%s415 + $0xd0] sm:$0xff]
        %v491 = vld [vmem:[%s415 + $0xd8] sm:$0xff]
        %v492 = vld [vmem:[%s415 + $0xe0] sm:$0xff]
        %v493 = vld [vmem:[%s415 + $0xe8] sm:$0xff]
        %v494 = vld [vmem:[%s415 + $0xf0] sm:$0xff]
        %v495 = vld [vmem:[%s415 + $0xf8] sm:$0xff]
        %v496 = vunpack.c.l.s8.bf16 %v464
        %v497 = vunpack.c.l.s8.bf16 %v465
        %v498 = vunpack.c.l.s8.bf16 %v466
        %v499 = vunpack.c.l.s8.bf16 %v467
        %v500 = vunpack.c.h.s8.bf16 %v464
        %v501 = vunpack.c.h.s8.bf16 %v465
        %v502 = vunpack.c.h.s8.bf16 %v466
        %v503 = vunpack.c.h.s8.bf16 %v467
        %v504 = vunpack.c.l.s8.bf16 %v468
        %v505 = vunpack.c.l.s8.bf16 %v469
        %v506 = vunpack.c.l.s8.bf16 %v470
        %v507 = vunpack.c.l.s8.bf16 %v471
        %v508 = vunpack.c.h.s8.bf16 %v468
        %v509 = vunpack.c.h.s8.bf16 %v469
        %v510 = vunpack.c.h.s8.bf16 %v470
        %v511 = vunpack.c.h.s8.bf16 %v471
        %v512 = vunpack.c.l.s8.bf16 %v472
        %v513 = vunpack.c.l.s8.bf16 %v473
        %v514 = vunpack.c.l.s8.bf16 %v474
        %v515 = vunpack.c.l.s8.bf16 %v475
        %v516 = vunpack.c.h.s8.bf16 %v472
        %v517 = vunpack.c.h.s8.bf16 %v473
        %v518 = vunpack.c.h.s8.bf16 %v474
        %v519 = vunpack.c.h.s8.bf16 %v475
        %v520 = vunpack.c.l.s8.bf16 %v476
        %v521 = vunpack.c.l.s8.bf16 %v477
        %v522 = vunpack.c.l.s8.bf16 %v478
        %v523 = vunpack.c.l.s8.bf16 %v479
        %v524 = vunpack.c.h.s8.bf16 %v476
        %v525 = vunpack.c.h.s8.bf16 %v477
        %v526 = vunpack.c.h.s8.bf16 %v478
        %v527 = vunpack.c.h.s8.bf16 %v479
        %v528 = vunpack.c.l.s8.bf16 %v480
        %v529 = vunpack.c.l.s8.bf16 %v481
        %v530 = vunpack.c.l.s8.bf16 %v482
        %v531 = vunpack.c.l.s8.bf16 %v483
        %v532 = vunpack.c.h.s8.bf16 %v480
        %v533 = vunpack.c.h.s8.bf16 %v481
        %v534 = vunpack.c.h.s8.bf16 %v482
        %v535 = vunpack.c.h.s8.bf16 %v483
        %v536 = vunpack.c.l.s8.bf16 %v484
        %v537 = vunpack.c.l.s8.bf16 %v485
        %v538 = vunpack.c.l.s8.bf16 %v486
        %v539 = vunpack.c.l.s8.bf16 %v487
        %v540 = vunpack.c.h.s8.bf16 %v484
        %v541 = vunpack.c.h.s8.bf16 %v485
        %v542 = vunpack.c.h.s8.bf16 %v486
        %v543 = vunpack.c.h.s8.bf16 %v487
        %v544 = vunpack.c.l.s8.bf16 %v488
        %v545 = vunpack.c.l.s8.bf16 %v489
        %v546 = vunpack.c.l.s8.bf16 %v490
        %v547 = vunpack.c.l.s8.bf16 %v491
        %v548 = vunpack.c.h.s8.bf16 %v488
        %v549 = vunpack.c.h.s8.bf16 %v489
        %v550 = vunpack.c.h.s8.bf16 %v490
        %v551 = vunpack.c.h.s8.bf16 %v491
        %v552 = vunpack.c.l.s8.bf16 %v492
        %v553 = vunpack.c.l.s8.bf16 %v493
        %v554 = vunpack.c.l.s8.bf16 %v494
        %v555 = vunpack.c.l.s8.bf16 %v495
        %v556 = vunpack.c.h.s8.bf16 %v492
        %v557 = vunpack.c.h.s8.bf16 %v493
        %v558 = vunpack.c.h.s8.bf16 %v494
        %v559 = vunpack.c.h.s8.bf16 %v495
        %v560 = vld [vmem:[#allocation2] sm:$0xff]
        %v561 = vld [vmem:[#allocation2 + $0x8] sm:$0xff]
        %v562 = vld [vmem:[#allocation2 + $0x10] sm:$0xff]
        %v563 = vld [vmem:[#allocation2 + $0x18] sm:$0xff]
        %v564 = vld [vmem:[#allocation2 + $0x20] sm:$0xff]
        %v565 = vld [vmem:[#allocation2 + $0x28] sm:$0xff]
        %v566 = vld [vmem:[#allocation2 + $0x30] sm:$0xff]
        %v567 = vld [vmem:[#allocation2 + $0x38] sm:$0xff]
        %v568 = vld [vmem:[#allocation2 + $0x40] sm:$0xff]
        %v569 = vld [vmem:[#allocation2 + $0x48] sm:$0xff]
        %v570 = vld [vmem:[#allocation2 + $0x50] sm:$0xff]
        %v571 = vld [vmem:[#allocation2 + $0x58] sm:$0xff]
        %v572 = vld [vmem:[#allocation2 + $0x60] sm:$0xff]
        %v573 = vld [vmem:[#allocation2 + $0x68] sm:$0xff]
        %v574 = vld [vmem:[#allocation2 + $0x70] sm:$0xff]
        %v575 = vld [vmem:[#allocation2 + $0x78] sm:$0xff]
        %v576 = vld [vmem:[#allocation2 + $0x80] sm:$0xff]
        %v577 = vld [vmem:[#allocation2 + $0x88] sm:$0xff]
        %v578 = vld [vmem:[#allocation2 + $0x90] sm:$0xff]
        %v579 = vld [vmem:[#allocation2 + $0x98] sm:$0xff]
        %v580 = vld [vmem:[#allocation2 + $0xa0] sm:$0xff]
        %v581 = vld [vmem:[#allocation2 + $0xa8] sm:$0xff]
        %v582 = vld [vmem:[#allocation2 + $0xb0] sm:$0xff]
        %v583 = vld [vmem:[#allocation2 + $0xb8] sm:$0xff]
        %v584 = vld [vmem:[#allocation2 + $0xc0] sm:$0xff]
        %v585 = vld [vmem:[#allocation2 + $0xc8] sm:$0xff]
        %v586 = vld [vmem:[#allocation2 + $0xd0] sm:$0xff]
        %v587 = vld [vmem:[#allocation2 + $0xd8] sm:$0xff]
        %v588 = vld [vmem:[#allocation2 + $0xe0] sm:$0xff]
        %v589 = vld [vmem:[#allocation2 + $0xe8] sm:$0xff]
        %v590 = vld [vmem:[#allocation2 + $0xf0] sm:$0xff]
        %v591 = vld [vmem:[#allocation2 + $0xf8] sm:$0xff]
        %v592 = vld [vmem:[#allocation3] sm:$0xf]
        %v593 = vld [vmem:[#allocation3 + $0x4] sm:$0xf]
        %v594 = vld [vmem:[#allocation3 + $0x8] sm:$0xf]
        %v595 = vld [vmem:[#allocation3 + $0xc] sm:$0xf]
        %v596 = vld [vmem:[#allocation3 + $0x10] sm:$0xf]
        %v597 = vld [vmem:[#allocation3 + $0x14] sm:$0xf]
        %v598 = vld [vmem:[#allocation3 + $0x18] sm:$0xf]
        %v599 = vld [vmem:[#allocation3 + $0x1c] sm:$0xf]
        %v600 = vld [vmem:[#allocation3 + $0x20] sm:$0xf]
        %v601 = vld [vmem:[#allocation3 + $0x24] sm:$0xf]
        %v602 = vld [vmem:[#allocation3 + $0x28] sm:$0xf]
        %v603 = vld [vmem:[#allocation3 + $0x2c] sm:$0xf]
        %v604 = vld [vmem:[#allocation3 + $0x30] sm:$0xf]
        %v605 = vld [vmem:[#allocation3 + $0x34] sm:$0xf]
        %v606 = vld [vmem:[#allocation3 + $0x38] sm:$0xf]
        %v607 = vld [vmem:[#allocation3 + $0x3c] sm:$0xf]
        %v608 = vld [vmem:[#allocation3 + $0x40] sm:$0xf]
        %v609 = vld [vmem:[#allocation3 + $0x44] sm:$0xf]
        %v610 = vld [vmem:[#allocation3 + $0x48] sm:$0xf]
        %v611 = vld [vmem:[#allocation3 + $0x4c] sm:$0xf]
        %v612 = vld [vmem:[#allocation3 + $0x50] sm:$0xf]
        %v613 = vld [vmem:[#allocation3 + $0x54] sm:$0xf]
        %v614 = vld [vmem:[#allocation3 + $0x58] sm:$0xf]
        %v615 = vld [vmem:[#allocation3 + $0x5c] sm:$0xf]
        %v616 = vld [vmem:[#allocation3 + $0x60] sm:$0xf]
        %v617 = vld [vmem:[#allocation3 + $0x64] sm:$0xf]
        %v618 = vld [vmem:[#allocation3 + $0x68] sm:$0xf]
        %v619 = vld [vmem:[#allocation3 + $0x6c] sm:$0xf]
        %v620 = vld [vmem:[#allocation3 + $0x70] sm:$0xf]
        %v621 = vld [vmem:[#allocation3 + $0x74] sm:$0xf]
        %v622 = vld [vmem:[#allocation3 + $0x78] sm:$0xf]
        %v623 = vld [vmem:[#allocation3 + $0x7c] sm:$0xf]
        %v624 = vld [vmem:[#allocation3 + $0x80] sm:$0xf]
        %v625 = vld [vmem:[#allocation3 + $0x84] sm:$0xf]
        %v626 = vld [vmem:[#allocation3 + $0x88] sm:$0xf]
        %v627 = vld [vmem:[#allocation3 + $0x8c] sm:$0xf]
        %v628 = vld [vmem:[#allocation3 + $0x90] sm:$0xf]
        %v629 = vld [vmem:[#allocation3 + $0x94] sm:$0xf]
        %v630 = vld [vmem:[#allocation3 + $0x98] sm:$0xf]
        %v631 = vld [vmem:[#allocation3 + $0x9c] sm:$0xf]
        %v632 = vld [vmem:[#allocation3 + $0xa0] sm:$0xf]
        %v633 = vld [vmem:[#allocation3 + $0xa4] sm:$0xf]
        %v634 = vld [vmem:[#allocation3 + $0xa8] sm:$0xf]
        %v635 = vld [vmem:[#allocation3 + $0xac] sm:$0xf]
        %v636 = vld [vmem:[#allocation3 + $0xb0] sm:$0xf]
        %v637 = vld [vmem:[#allocation3 + $0xb4] sm:$0xf]
        %v638 = vld [vmem:[#allocation3 + $0xb8] sm:$0xf]
        %v639 = vld [vmem:[#allocation3 + $0xbc] sm:$0xf]
        %v640 = vld [vmem:[#allocation3 + $0xc0] sm:$0xf]
        %v641 = vld [vmem:[#allocation3 + $0xc4] sm:$0xf]
        %v642 = vld [vmem:[#allocation3 + $0xc8] sm:$0xf]
        %v643 = vld [vmem:[#allocation3 + $0xcc] sm:$0xf]
        %v644 = vld [vmem:[#allocation3 + $0xd0] sm:$0xf]
        %v645 = vld [vmem:[#allocation3 + $0xd4] sm:$0xf]
        %v646 = vld [vmem:[#allocation3 + $0xd8] sm:$0xf]
        %v647 = vld [vmem:[#allocation3 + $0xdc] sm:$0xf]
        %v648 = vld [vmem:[#allocation3 + $0xe0] sm:$0xf]
        %v649 = vld [vmem:[#allocation3 + $0xe4] sm:$0xf]
        %v650 = vld [vmem:[#allocation3 + $0xe8] sm:$0xf]
        %v651 = vld [vmem:[#allocation3 + $0xec] sm:$0xf]
        %v652 = vld [vmem:[#allocation3 + $0xf0] sm:$0xf]
        %v653 = vld [vmem:[#allocation3 + $0xf4] sm:$0xf]
        %v654 = vld [vmem:[#allocation3 + $0xf8] sm:$0xf]
        %v655 = vld [vmem:[#allocation3 + $0xfc] sm:$0xf]
        %v720 = vunpack.c.l.b16 %v592
        %v721 = vunpack.c.l.b16 %v593
        %v722 = vunpack.c.l.b16 %v594
        %v723 = vunpack.c.l.b16 %v595
        %v724 = vunpack.c.l.b16 %v596
        %v725 = vunpack.c.l.b16 %v597
        %v726 = vunpack.c.l.b16 %v598
        %v727 = vunpack.c.l.b16 %v599
        %v728 = vunpack.c.l.b16 %v600
        %v729 = vunpack.c.l.b16 %v601
        %v730 = vunpack.c.l.b16 %v602
        %v731 = vunpack.c.l.b16 %v603
        %v732 = vunpack.c.l.b16 %v604
        %v733 = vunpack.c.l.b16 %v605
        %v734 = vunpack.c.l.b16 %v606
        %v735 = vunpack.c.l.b16 %v607
        %v736 = vunpack.c.l.b16 %v608
        %v737 = vunpack.c.l.b16 %v609
        %v738 = vunpack.c.l.b16 %v610
        %v739 = vunpack.c.l.b16 %v611
        %v740 = vunpack.c.l.b16 %v612
        %v741 = vunpack.c.l.b16 %v613
        %v742 = vunpack.c.l.b16 %v614
        %v743 = vunpack.c.l.b16 %v615
        %v744 = vunpack.c.l.b16 %v616
        %v745 = vunpack.c.l.b16 %v617
        %v746 = vunpack.c.l.b16 %v618
        %v747 = vunpack.c.l.b16 %v619
        %v748 = vunpack.c.l.b16 %v620
        %v749 = vunpack.c.l.b16 %v621
        %v750 = vunpack.c.l.b16 %v622
        %v751 = vunpack.c.l.b16 %v623
        %v752 = vunpack.c.l.b16 %v624
        %v753 = vunpack.c.l.b16 %v625
        %v754 = vunpack.c.l.b16 %v626
        %v755 = vunpack.c.l.b16 %v627
        %v756 = vunpack.c.l.b16 %v628
        %v757 = vunpack.c.l.b16 %v629
        %v758 = vunpack.c.l.b16 %v630
        %v759 = vunpack.c.l.b16 %v631
        %v760 = vunpack.c.l.b16 %v632
        %v761 = vunpack.c.l.b16 %v633
        %v762 = vunpack.c.l.b16 %v634
        %v763 = vunpack.c.l.b16 %v635
        %v764 = vunpack.c.l.b16 %v636
        %v765 = vunpack.c.l.b16 %v637
        %v766 = vunpack.c.l.b16 %v638
        %v767 = vunpack.c.l.b16 %v639
        %v768 = vunpack.c.l.b16 %v640
        %v769 = vunpack.c.l.b16 %v641
        %v770 = vunpack.c.l.b16 %v642
        %v771 = vunpack.c.l.b16 %v643
        %v772 = vunpack.c.l.b16 %v644
        %v773 = vunpack.c.l.b16 %v645
        %v774 = vunpack.c.l.b16 %v646
        %v775 = vunpack.c.l.b16 %v647
        %v776 = vunpack.c.l.b16 %v648
        %v777 = vunpack.c.l.b16 %v649
        %v778 = vunpack.c.l.b16 %v650
        %v779 = vunpack.c.l.b16 %v651
        %v780 = vunpack.c.l.b16 %v652
        %v781 = vunpack.c.l.b16 %v653
        %v782 = vunpack.c.l.b16 %v654
        %v783 = vunpack.c.l.b16 %v655
        %v784 = vpack.c.b16 %v721, %v720
        %v785 = vpack.c.b16 %v723, %v722
        %v786 = vpack.c.b16 %v725, %v724
        %v787 = vpack.c.b16 %v727, %v726
        %v788 = vpack.c.b16 %v729, %v728
        %v789 = vpack.c.b16 %v731, %v730
        %v790 = vpack.c.b16 %v733, %v732
        %v791 = vpack.c.b16 %v735, %v734
        %v792 = vpack.c.b16 %v737, %v736
        %v793 = vpack.c.b16 %v739, %v738
        %v794 = vpack.c.b16 %v741, %v740
        %v795 = vpack.c.b16 %v743, %v742
        %v796 = vpack.c.b16 %v745, %v744
        %v797 = vpack.c.b16 %v747, %v746
        %v798 = vpack.c.b16 %v749, %v748
        %v799 = vpack.c.b16 %v751, %v750
        %v800 = vpack.c.b16 %v753, %v752
        %v801 = vpack.c.b16 %v755, %v754
        %v802 = vpack.c.b16 %v757, %v756
        %v803 = vpack.c.b16 %v759, %v758
        %v804 = vpack.c.b16 %v761, %v760
        %v805 = vpack.c.b16 %v763, %v762
        %v806 = vpack.c.b16 %v765, %v764
        %v807 = vpack.c.b16 %v767, %v766
        %v808 = vpack.c.b16 %v769, %v768
        %v809 = vpack.c.b16 %v771, %v770
        %v810 = vpack.c.b16 %v773, %v772
        %v811 = vpack.c.b16 %v775, %v774
        %v812 = vpack.c.b16 %v777, %v776
        %v813 = vpack.c.b16 %v779, %v778
        %v814 = vpack.c.b16 %v781, %v780
        %v815 = vpack.c.b16 %v783, %v782
        %848 = vmatprep.subr.bf16.mxu0 0
        %849 = vmatpush1.bf16.msra.mxu0 %v784
        %850 = vmatprep.subr.bf16.mxu0 0
        %851 = vmatpush1.bf16.msra.mxu0 %v785
        %852 = vmatprep.subr.bf16.mxu0 0
        %853 = vmatpush1.bf16.msra.mxu0 %v786
        %854 = vmatprep.subr.bf16.mxu0 0
        %855 = vmatpush1.bf16.msra.mxu0 %v787
        %856 = vmatprep.subr.bf16.mxu0 0
        %857 = vmatpush1.bf16.msra.mxu0 %v788
        %858 = vmatprep.subr.bf16.mxu0 0
        %859 = vmatpush1.bf16.msra.mxu0 %v789
        %860 = vmatprep.subr.bf16.mxu0 0
        %861 = vmatpush1.bf16.msra.mxu0 %v790
        %862 = vmatprep.subr.bf16.mxu0 0
        %863 = vmatpush1.bf16.msra.mxu0 %v791
        %864 = vmatprep.subr.bf16.mxu0 0
        %865 = vmatpush1.bf16.msra.mxu0 %v792
        %866 = vmatprep.subr.bf16.mxu0 0
        %867 = vmatpush1.bf16.msra.mxu0 %v793
        %868 = vmatprep.subr.bf16.mxu0 0
        %869 = vmatpush1.bf16.msra.mxu0 %v794
        %870 = vmatprep.subr.bf16.mxu0 0
        %871 = vmatpush1.bf16.msra.mxu0 %v795
        %872 = vmatprep.subr.bf16.mxu0 0
        %873 = vmatpush1.bf16.msra.mxu0 %v796
        %874 = vmatprep.subr.bf16.mxu0 0
        %875 = vmatpush1.bf16.msra.mxu0 %v797
        %876 = vmatprep.subr.bf16.mxu0 0
        %877 = vmatpush1.bf16.msra.mxu0 %v798
        %878 = vmatprep.subr.bf16.mxu0 0
        %879 = vmatpush1.bf16.msra.mxu0 %v799
        %880 = vmatprep.mubr.bf16.mxu0 %v497
        %881 = vmatmul.mubr.bf16.gmra.mrb[0].mxu0 %v496
        %v882 = vpop.f32.mrb[0].mxu0
        %v883 = vadd.f32 0.0, %v882
        %v884 = vpop.f32.mrb[0].mxu0
        %v885 = vpop.f32.mrb[0].mxu0
        %v886 = vadd.f32 0.0, %v885
        %v887 = vpop.f32.mrb[0].mxu0
        %888 = vmatprep.mubr.bf16.mxu0 %v501
        %889 = vmatmul.mubr.bf16.gmra.mrb[0].mxu0 %v500
        %v890 = vpop.f32.mrb[0].mxu0
        %v891 = vadd.f32 0.0, %v890
        %v892 = vpop.f32.mrb[0].mxu0
        %v893 = vpop.f32.mrb[0].mxu0
        %v894 = vadd.f32 0.0, %v893
        %v895 = vpop.f32.mrb[0].mxu0
        %896 = vmatprep.mubr.bf16.mxu0 %v505
        %897 = vmatmul.mubr.bf16.gmra.mrb[0].mxu0 %v504
        %v898 = vpop.f32.mrb[0].mxu0
        %v899 = vadd.f32 0.0, %v898
        %v900 = vpop.f32.mrb[0].mxu0
        %v901 = vpop.f32.mrb[0].mxu0
        %v902 = vadd.f32 0.0, %v901
        %v903 = vpop.f32.mrb[0].mxu0
        %904 = vmatprep.mubr.bf16.mxu0 %v509
        %905 = vmatmul.mubr.bf16.gmra.mrb[0].mxu0 %v508
        %v906 = vpop.f32.mrb[0].mxu0
        %v907 = vadd.f32 0.0, %v906
        %v908 = vpop.f32.mrb[0].mxu0
        %v909 = vpop.f32.mrb[0].mxu0
        %v910 = vadd.f32 0.0, %v909
        %v911 = vpop.f32.mrb[0].mxu0
        %912 = vmatprep.mubr.bf16.mxu0 %v513
        %913 = vmatmul.mubr.bf16.gmra.mrb[0].mxu0 %v512
        %v914 = vpop.f32.mrb[0].mxu0
        %v915 = vadd.f32 0.0, %v914
        %v916 = vpop.f32.mrb[0].mxu0
        %v917 = vpop.f32.mrb[0].mxu0
        %v918 = vadd.f32 0.0, %v917
        %v919 = vpop.f32.mrb[0].mxu0
        %920 = vmatprep.mubr.bf16.mxu0 %v517
        %921 = vmatmul.mubr.bf16.gmra.mrb[0].mxu0 %v516
        %v922 = vpop.f32.mrb[0].mxu0
        %v923 = vadd.f32 0.0, %v922
        %v924 = vpop.f32.mrb[0].mxu0
        %v925 = vpop.f32.mrb[0].mxu0
        %v926 = vadd.f32 0.0, %v925
        %v927 = vpop.f32.mrb[0].mxu0
        %928 = vmatprep.mubr.bf16.mxu0 %v521
        %929 = vmatmul.mubr.bf16.gmra.mrb[0].mxu0 %v520
        %v930 = vpop.f32.mrb[0].mxu0
        %v931 = vadd.f32 0.0, %v930
        %v932 = vpop.f32.mrb[0].mxu0
        %v933 = vpop.f32.mrb[0].mxu0
        %v934 = vadd.f32 0.0, %v933
        %v935 = vpop.f32.mrb[0].mxu0
        %936 = vmatprep.mubr.bf16.mxu0 %v525
        %937 = vmatmul.mubr.bf16.gmra.mrb[0].mxu0 %v524
        %v938 = vpop.f32.mrb[0].mxu0
        %v939 = vadd.f32 0.0, %v938
        %v940 = vpop.f32.mrb[0].mxu0
        %v941 = vpop.f32.mrb[0].mxu0
        %v942 = vadd.f32 0.0, %v941
        %v943 = vpop.f32.mrb[0].mxu0
        %944 = vmatprep.mubr.bf16.mxu0 %v529
        %945 = vmatmul.mubr.bf16.gmra.mrb[0].mxu0 %v528
        %v946 = vpop.f32.mrb[0].mxu0
        %v947 = vadd.f32 0.0, %v946
        %v948 = vpop.f32.mrb[0].mxu0
        %v949 = vpop.f32.mrb[0].mxu0
        %v950 = vadd.f32 0.0, %v949
        %v951 = vpop.f32.mrb[0].mxu0
        %952 = vmatprep.mubr.bf16.mxu0 %v533
        %953 = vmatmul.mubr.bf16.gmra.mrb[0].mxu0 %v532
        %v954 = vpop.f32.mrb[0].mxu0
        %v955 = vadd.f32 0.0, %v954
        %v956 = vpop.f32.mrb[0].mxu0
        %v957 = vpop.f32.mrb[0].mxu0
        %v958 = vadd.f32 0.0, %v957
        %v959 = vpop.f32.mrb[0].mxu0
        %960 = vmatprep.mubr.bf16.mxu0 %v537
        %961 = vmatmul.mubr.bf16.gmra.mrb[0].mxu0 %v536
        %v962 = vpop.f32.mrb[0].mxu0
        %v963 = vadd.f32 0.0, %v962
        %v964 = vpop.f32.mrb[0].mxu0
        %v965 = vpop.f32.mrb[0].mxu0
        %v966 = vadd.f32 0.0, %v965
        %v967 = vpop.f32.mrb[0].mxu0
        %968 = vmatprep.mubr.bf16.mxu0 %v541
        %969 = vmatmul.mubr.bf16.gmra.mrb[0].mxu0 %v540
        %v970 = vpop.f32.mrb[0].mxu0
        %v971 = vadd.f32 0.0, %v970
        %v972 = vpop.f32.mrb[0].mxu0
        %v973 = vpop.f32.mrb[0].mxu0
        %v974 = vadd.f32 0.0, %v973
        %v975 = vpop.f32.mrb[0].mxu0
        %976 = vmatprep.mubr.bf16.mxu0 %v545
        %977 = vmatmul.mubr.bf16.gmra.mrb[0].mxu0 %v544
        %v978 = vpop.f32.mrb[0].mxu0
        %v979 = vadd.f32 0.0, %v978
        %v980 = vpop.f32.mrb[0].mxu0
        %v981 = vpop.f32.mrb[0].mxu0
        %v982 = vadd.f32 0.0, %v981
        %v983 = vpop.f32.mrb[0].mxu0
        %984 = vmatprep.mubr.bf16.mxu0 %v549
        %985 = vmatmul.mubr.bf16.gmra.mrb[0].mxu0 %v548
        %v986 = vpop.f32.mrb[0].mxu0
        %v987 = vadd.f32 0.0, %v986
        %v988 = vpop.f32.mrb[0].mxu0
        %v989 = vpop.f32.mrb[0].mxu0
        %v990 = vadd.f32 0.0, %v989
        %v991 = vpop.f32.mrb[0].mxu0
        %992 = vmatprep.mubr.bf16.mxu0 %v553
        %993 = vmatmul.mubr.bf16.gmra.mrb[0].mxu0 %v552
        %v994 = vpop.f32.mrb[0].mxu0
        %v995 = vadd.f32 0.0, %v994
        %v996 = vpop.f32.mrb[0].mxu0
        %v997 = vpop.f32.mrb[0].mxu0
        %v998 = vadd.f32 0.0, %v997
        %v999 = vpop.f32.mrb[0].mxu0
        %1000 = vmatprep.mubr.bf16.mxu0 %v557
        %1001 = vmatmul.mubr.bf16.gmra.mrb[0].mxu0 %v556
        %v1002 = vpop.f32.mrb[0].mxu0
        %v1003 = vadd.f32 0.0, %v1002
        %v1004 = vpop.f32.mrb[0].mxu0
        %v1005 = vpop.f32.mrb[0].mxu0
        %v1006 = vadd.f32 0.0, %v1005
        %v1007 = vpop.f32.mrb[0].mxu0
        %1008 = vdwg.mxu0
        %1009 = vmatprep.subr.bf16.mxu0 0
        %1010 = vmatpush1.bf16.msra.mxu0 %v800
        %1011 = vmatprep.subr.bf16.mxu0 0
        %1012 = vmatpush1.bf16.msra.mxu0 %v801
        %1013 = vmatprep.subr.bf16.mxu0 0
        %1014 = vmatpush1.bf16.msra.mxu0 %v802
        %1015 = vmatprep.subr.bf16.mxu0 0
        %1016 = vmatpush1.bf16.msra.mxu0 %v803
        %1017 = vmatprep.subr.bf16.mxu0 0
        %1018 = vmatpush1.bf16.msra.mxu0 %v804
        %1019 = vmatprep.subr.bf16.mxu0 0
        %1020 = vmatpush1.bf16.msra.mxu0 %v805
        %1021 = vmatprep.subr.bf16.mxu0 0
        %1022 = vmatpush1.bf16.msra.mxu0 %v806
        %1023 = vmatprep.subr.bf16.mxu0 0
        %1024 = vmatpush1.bf16.msra.mxu0 %v807
        %1025 = vmatprep.subr.bf16.mxu0 0
        %1026 = vmatpush1.bf16.msra.mxu0 %v808
        %1027 = vmatprep.subr.bf16.mxu0 0
        %1028 = vmatpush1.bf16.msra.mxu0 %v809
        %1029 = vmatprep.subr.bf16.mxu0 0
        %1030 = vmatpush1.bf16.msra.mxu0 %v810
        %1031 = vmatprep.subr.bf16.mxu0 0
        %1032 = vmatpush1.bf16.msra.mxu0 %v811
        %1033 = vmatprep.subr.bf16.mxu0 0
        %1034 = vmatpush1.bf16.msra.mxu0 %v812
        %1035 = vmatprep.subr.bf16.mxu0 0
        %1036 = vmatpush1.bf16.msra.mxu0 %v813
        %1037 = vmatprep.subr.bf16.mxu0 0
        %1038 = vmatpush1.bf16.msra.mxu0 %v814
        %1039 = vmatprep.subr.bf16.mxu0 0
        %1040 = vmatpush1.bf16.msra.mxu0 %v815
        %1041 = vmatprep.mubr.bf16.mxu0 %v499
        %1042 = vmatmul.mubr.bf16.gmra.mrb[0].mxu0 %v498
        %v1043 = vpop.f32.mrb[0].mxu0
        %v1044 = vadd.f32 %v883, %v1043
        %v1045 = vpop.f32.mrb[0].mxu0
        %v1046 = vpop.f32.mrb[0].mxu0
        %v1047 = vadd.f32 %v886, %v1046
        %v1048 = vpop.f32.mrb[0].mxu0
        %1049 = vmatprep.mubr.bf16.mxu0 %v503
        %1050 = vmatmul.mubr.bf16.gmra.mrb[0].mxu0 %v502
        %v1051 = vpop.f32.mrb[0].mxu0
        %v1052 = vadd.f32 %v891, %v1051
        %v1053 = vpop.f32.mrb[0].mxu0
        %v1054 = vpop.f32.mrb[0].mxu0
        %v1055 = vadd.f32 %v894, %v1054
        %v1056 = vpop.f32.mrb[0].mxu0
        %1057 = vmatprep.mubr.bf16.mxu0 %v507
        %1058 = vmatmul.mubr.bf16.gmra.mrb[0].mxu0 %v506
        %v1059 = vpop.f32.mrb[0].mxu0
        %v1060 = vadd.f32 %v899, %v1059
        %v1061 = vpop.f32.mrb[0].mxu0
        %v1062 = vpop.f32.mrb[0].mxu0
        %v1063 = vadd.f32 %v902, %v1062
        %v1064 = vpop.f32.mrb[0].mxu0
        %1065 = vmatprep.mubr.bf16.mxu0 %v511
        %1066 = vmatmul.mubr.bf16.gmra.mrb[0].mxu0 %v510
        %v1067 = vpop.f32.mrb[0].mxu0
        %v1068 = vadd.f32 %v907, %v1067
        %v1069 = vpop.f32.mrb[0].mxu0
        %v1070 = vpop.f32.mrb[0].mxu0
        %v1071 = vadd.f32 %v910, %v1070
        %v1072 = vpop.f32.mrb[0].mxu0
        %1073 = vmatprep.mubr.bf16.mxu0 %v515
        %1074 = vmatmul.mubr.bf16.gmra.mrb[0].mxu0 %v514
        %v1075 = vpop.f32.mrb[0].mxu0
        %v1076 = vadd.f32 %v915, %v1075
        %v1077 = vpop.f32.mrb[0].mxu0
        %v1078 = vpop.f32.mrb[0].mxu0
        %v1079 = vadd.f32 %v918, %v1078
        %v1080 = vpop.f32.mrb[0].mxu0
        %1081 = vmatprep.mubr.bf16.mxu0 %v519
        %1082 = vmatmul.mubr.bf16.gmra.mrb[0].mxu0 %v518
        %v1083 = vpop.f32.mrb[0].mxu0
        %v1084 = vadd.f32 %v923, %v1083
        %v1085 = vpop.f32.mrb[0].mxu0
        %v1086 = vpop.f32.mrb[0].mxu0
        %v1087 = vadd.f32 %v926, %v1086
        %v1088 = vpop.f32.mrb[0].mxu0
        %1089 = vmatprep.mubr.bf16.mxu0 %v523
        %1090 = vmatmul.mubr.bf16.gmra.mrb[0].mxu0 %v522
        %v1091 = vpop.f32.mrb[0].mxu0
        %v1092 = vadd.f32 %v931, %v1091
        %v1093 = vpop.f32.mrb[0].mxu0
        %v1094 = vpop.f32.mrb[0].mxu0
        %v1095 = vadd.f32 %v934, %v1094
        %v1096 = vpop.f32.mrb[0].mxu0
        %1097 = vmatprep.mubr.bf16.mxu0 %v527
        %1098 = vmatmul.mubr.bf16.gmra.mrb[0].mxu0 %v526
        %v1099 = vpop.f32.mrb[0].mxu0
        %v1100 = vadd.f32 %v939, %v1099
        %v1101 = vpop.f32.mrb[0].mxu0
        %v1102 = vpop.f32.mrb[0].mxu0
        %v1103 = vadd.f32 %v942, %v1102
        %v1104 = vpop.f32.mrb[0].mxu0
        %1105 = vmatprep.mubr.bf16.mxu0 %v531
        %1106 = vmatmul.mubr.bf16.gmra.mrb[0].mxu0 %v530
        %v1107 = vpop.f32.mrb[0].mxu0
        %v1108 = vadd.f32 %v947, %v1107
        %v1109 = vpop.f32.mrb[0].mxu0
        %v1110 = vpop.f32.mrb[0].mxu0
        %v1111 = vadd.f32 %v950, %v1110
        %v1112 = vpop.f32.mrb[0].mxu0
        %1113 = vmatprep.mubr.bf16.mxu0 %v535
        %1114 = vmatmul.mubr.bf16.gmra.mrb[0].mxu0 %v534
        %v1115 = vpop.f32.mrb[0].mxu0
        %v1116 = vadd.f32 %v955, %v1115
        %v1117 = vpop.f32.mrb[0].mxu0
        %v1118 = vpop.f32.mrb[0].mxu0
        %v1119 = vadd.f32 %v958, %v1118
        %v1120 = vpop.f32.mrb[0].mxu0
        %1121 = vmatprep.mubr.bf16.mxu0 %v539
        %1122 = vmatmul.mubr.bf16.gmra.mrb[0].mxu0 %v538
        %v1123 = vpop.f32.mrb[0].mxu0
        %v1124 = vadd.f32 %v963, %v1123
        %v1125 = vpop.f32.mrb[0].mxu0
        %v1126 = vpop.f32.mrb[0].mxu0
        %v1127 = vadd.f32 %v966, %v1126
        %v1128 = vpop.f32.mrb[0].mxu0
        %1129 = vmatprep.mubr.bf16.mxu0 %v543
        %1130 = vmatmul.mubr.bf16.gmra.mrb[0].mxu0 %v542
        %v1131 = vpop.f32.mrb[0].mxu0
        %v1132 = vadd.f32 %v971, %v1131
        %v1133 = vpop.f32.mrb[0].mxu0
        %v1134 = vpop.f32.mrb[0].mxu0
        %v1135 = vadd.f32 %v974, %v1134
        %v1136 = vpop.f32.mrb[0].mxu0
        %1137 = vmatprep.mubr.bf16.mxu0 %v547
        %1138 = vmatmul.mubr.bf16.gmra.mrb[0].mxu0 %v546
        %v1139 = vpop.f32.mrb[0].mxu0
        %v1140 = vadd.f32 %v979, %v1139
        %v1141 = vpop.f32.mrb[0].mxu0
        %v1142 = vpop.f32.mrb[0].mxu0
        %v1143 = vadd.f32 %v982, %v1142
        %v1144 = vpop.f32.mrb[0].mxu0
        %1145 = vmatprep.mubr.bf16.mxu0 %v551
        %1146 = vmatmul.mubr.bf16.gmra.mrb[0].mxu0 %v550
        %v1147 = vpop.f32.mrb[0].mxu0
        %v1148 = vadd.f32 %v987, %v1147
        %v1149 = vpop.f32.mrb[0].mxu0
        %v1150 = vpop.f32.mrb[0].mxu0
        %v1151 = vadd.f32 %v990, %v1150
        %v1152 = vpop.f32.mrb[0].mxu0
        %1153 = vmatprep.mubr.bf16.mxu0 %v555
        %1154 = vmatmul.mubr.bf16.gmra.mrb[0].mxu0 %v554
        %v1155 = vpop.f32.mrb[0].mxu0
        %v1156 = vadd.f32 %v995, %v1155
        %v1157 = vpop.f32.mrb[0].mxu0
        %v1158 = vpop.f32.mrb[0].mxu0
        %v1159 = vadd.f32 %v998, %v1158
        %v1160 = vpop.f32.mrb[0].mxu0
        %1161 = vmatprep.mubr.bf16.mxu0 %v559
        %1162 = vmatmul.mubr.bf16.gmra.mrb[0].mxu0 %v558
        %v1163 = vpop.f32.mrb[0].mxu0
        %v1164 = vadd.f32 %v1003, %v1163
        %v1165 = vpop.f32.mrb[0].mxu0
        %v1166 = vpop.f32.mrb[0].mxu0
        %v1167 = vadd.f32 %v1006, %v1166
        %v1168 = vpop.f32.mrb[0].mxu0
        %1169 = vdwg.mxu0
        %v1170 = vadd.f32 %v560, %v1044
        %v1171 = vadd.f32 %v561, %v1047
        %v1172 = vadd.f32 %v562, %v1052
        %v1173 = vadd.f32 %v563, %v1055
        %v1174 = vadd.f32 %v564, %v1060
        %v1175 = vadd.f32 %v565, %v1063
        %v1176 = vadd.f32 %v566, %v1068
        %v1177 = vadd.f32 %v567, %v1071
        %v1178 = vadd.f32 %v568, %v1076
        %v1179 = vadd.f32 %v569, %v1079
        %v1180 = vadd.f32 %v570, %v1084
        %v1181 = vadd.f32 %v571, %v1087
        %v1182 = vadd.f32 %v572, %v1092
        %v1183 = vadd.f32 %v573, %v1095
        %v1184 = vadd.f32 %v574, %v1100
        %v1185 = vadd.f32 %v575, %v1103
        %v1186 = vadd.f32 %v576, %v1108
        %v1187 = vadd.f32 %v577, %v1111
        %v1188 = vadd.f32 %v578, %v1116
        %v1189 = vadd.f32 %v579, %v1119
        %v1190 = vadd.f32 %v580, %v1124
        %v1191 = vadd.f32 %v581, %v1127
        %v1192 = vadd.f32 %v582, %v1132
        %v1193 = vadd.f32 %v583, %v1135
        %v1194 = vadd.f32 %v584, %v1140
        %v1195 = vadd.f32 %v585, %v1143
        %v1196 = vadd.f32 %v586, %v1148
        %v1197 = vadd.f32 %v587, %v1151
        %v1198 = vadd.f32 %v588, %v1156
        %v1199 = vadd.f32 %v589, %v1159
        %v1200 = vadd.f32 %v590, %v1164
        %v1201 = vadd.f32 %v591, %v1167
        %1202 = vst [vmem:[#allocation2] sm:$0xff] %v1170
        %1203 = vst [vmem:[#allocation2 + $0x8] sm:$0xff] %v1171
        %1204 = vst [vmem:[#allocation2 + $0x10] sm:$0xff] %v1172
        %1205 = vst [vmem:[#allocation2 + $0x18] sm:$0xff] %v1173
        %1206 = vst [vmem:[#allocation2 + $0x20] sm:$0xff] %v1174
        %1207 = vst [vmem:[#allocation2 + $0x28] sm:$0xff] %v1175
        %1208 = vst [vmem:[#allocation2 + $0x30] sm:$0xff] %v1176
        %1209 = vst [vmem:[#allocation2 + $0x38] sm:$0xff] %v1177
        %1210 = vst [vmem:[#allocation2 + $0x40] sm:$0xff] %v1178
        %1211 = vst [vmem:[#allocation2 + $0x48] sm:$0xff] %v1179
        %1212 = vst [vmem:[#allocation2 + $0x50] sm:$0xff] %v1180
        %1213 = vst [vmem:[#allocation2 + $0x58] sm:$0xff] %v1181
        %1214 = vst [vmem:[#allocation2 + $0x60] sm:$0xff] %v1182
        %1215 = vst [vmem:[#allocation2 + $0x68] sm:$0xff] %v1183
        %1216 = vst [vmem:[#allocation2 + $0x70] sm:$0xff] %v1184
        %1217 = vst [vmem:[#allocation2 + $0x78] sm:$0xff] %v1185
        %1218 = vst [vmem:[#allocation2 + $0x80] sm:$0xff] %v1186
        %1219 = vst [vmem:[#allocation2 + $0x88] sm:$0xff] %v1187
        %1220 = vst [vmem:[#allocation2 + $0x90] sm:$0xff] %v1188
        %1221 = vst [vmem:[#allocation2 + $0x98] sm:$0xff] %v1189
        %1222 = vst [vmem:[#allocation2 + $0xa0] sm:$0xff] %v1190
        %1223 = vst [vmem:[#allocation2 + $0xa8] sm:$0xff] %v1191
        %1224 = vst [vmem:[#allocation2 + $0xb0] sm:$0xff] %v1192
        %1225 = vst [vmem:[#allocation2 + $0xb8] sm:$0xff] %v1193
        %1226 = vst [vmem:[#allocation2 + $0xc0] sm:$0xff] %v1194
        %1227 = vst [vmem:[#allocation2 + $0xc8] sm:$0xff] %v1195
        %1228 = vst [vmem:[#allocation2 + $0xd0] sm:$0xff] %v1196
        %1229 = vst [vmem:[#allocation2 + $0xd8] sm:$0xff] %v1197
        %1230 = vst [vmem:[#allocation2 + $0xe0] sm:$0xff] %v1198
        %1231 = vst [vmem:[#allocation2 + $0xe8] sm:$0xff] %v1199
        %1232 = vst [vmem:[#allocation2 + $0xf0] sm:$0xff] %v1200
        %1233 = vst [vmem:[#allocation2 + $0xf8] sm:$0xff] %v1201
        // Predicated region
        $region69: #{tpu_custom_call.1} parent=47 // pred_check
          %p1234 = pneg %p428
        $region70: #{tpu_custom_call.1} parent=47 // pred_check_branch
          %1236 = sbr.rel (%p1234) target = $region72
        $region71: #{tpu_custom_call.1} parent=47 // pred_region
          %v1237 = vld [vmem:[#allocation2] sm:$0xff]
          %v1238 = vld [vmem:[#allocation2 + $0x8] sm:$0xff]
          %v1239 = vld [vmem:[#allocation2 + $0x10] sm:$0xff]
          %v1240 = vld [vmem:[#allocation2 + $0x18] sm:$0xff]
          %v1241 = vld [vmem:[#allocation2 + $0x20] sm:$0xff]
          %v1242 = vld [vmem:[#allocation2 + $0x28] sm:$0xff]
          %v1243 = vld [vmem:[#allocation2 + $0x30] sm:$0xff]
          %v1244 = vld [vmem:[#allocation2 + $0x38] sm:$0xff]
          %v1245 = vld [vmem:[#allocation2 + $0x40] sm:$0xff]
          %v1246 = vld [vmem:[#allocation2 + $0x48] sm:$0xff]
          %v1247 = vld [vmem:[#allocation2 + $0x50] sm:$0xff]
          %v1248 = vld [vmem:[#allocation2 + $0x58] sm:$0xff]
          %v1249 = vld [vmem:[#allocation2 + $0x60] sm:$0xff]
          %v1250 = vld [vmem:[#allocation2 + $0x68] sm:$0xff]
          %v1251 = vld [vmem:[#allocation2 + $0x70] sm:$0xff]
          %v1252 = vld [vmem:[#allocation2 + $0x78] sm:$0xff]
          %v1253 = vld [vmem:[#allocation2 + $0x80] sm:$0xff]
          %v1254 = vld [vmem:[#allocation2 + $0x88] sm:$0xff]
          %v1255 = vld [vmem:[#allocation2 + $0x90] sm:$0xff]
          %v1256 = vld [vmem:[#allocation2 + $0x98] sm:$0xff]
          %v1257 = vld [vmem:[#allocation2 + $0xa0] sm:$0xff]
          %v1258 = vld [vmem:[#allocation2 + $0xa8] sm:$0xff]
          %v1259 = vld [vmem:[#allocation2 + $0xb0] sm:$0xff]
          %v1260 = vld [vmem:[#allocation2 + $0xb8] sm:$0xff]
          %v1261 = vld [vmem:[#allocation2 + $0xc0] sm:$0xff]
          %v1262 = vld [vmem:[#allocation2 + $0xc8] sm:$0xff]
          %v1263 = vld [vmem:[#allocation2 + $0xd0] sm:$0xff]
          %v1264 = vld [vmem:[#allocation2 + $0xd8] sm:$0xff]
          %v1265 = vld [vmem:[#allocation2 + $0xe0] sm:$0xff]
          %v1266 = vld [vmem:[#allocation2 + $0xe8] sm:$0xff]
          %v1267 = vld [vmem:[#allocation2 + $0xf0] sm:$0xff]
          %v1268 = vld [vmem:[#allocation2 + $0xf8] sm:$0xff]
          %v1269 = vld [vmem:[%s424] sm:$0xff]
          %v1270 = vld [vmem:[%s424 + $0x8] sm:$0xff]
          %v1271 = vld [vmem:[%s424 + $0x10] sm:$0xff]
          %v1272 = vld [vmem:[%s424 + $0x18] sm:$0xff]
          %v1273 = vld [vmem:[%s424 + $0x20] sm:$0xff]
          %v1274 = vld [vmem:[%s424 + $0x28] sm:$0xff]
          %v1275 = vld [vmem:[%s424 + $0x30] sm:$0xff]
          %v1276 = vld [vmem:[%s424 + $0x38] sm:$0xff]
          %v1277 = vld [vmem:[%s424 + $0x40] sm:$0xff]
          %v1278 = vld [vmem:[%s424 + $0x48] sm:$0xff]
          %v1279 = vld [vmem:[%s424 + $0x50] sm:$0xff]
          %v1280 = vld [vmem:[%s424 + $0x58] sm:$0xff]
          %v1281 = vld [vmem:[%s424 + $0x60] sm:$0xff]
          %v1282 = vld [vmem:[%s424 + $0x68] sm:$0xff]
          %v1283 = vld [vmem:[%s424 + $0x70] sm:$0xff]
          %v1284 = vld [vmem:[%s424 + $0x78] sm:$0xff]
          %v1285 = vld [vmem:[%s424 + $0x80] sm:$0xff]
          %v1286 = vld [vmem:[%s424 + $0x88] sm:$0xff]
          %v1287 = vld [vmem:[%s424 + $0x90] sm:$0xff]
          %v1288 = vld [vmem:[%s424 + $0x98] sm:$0xff]
          %v1289 = vld [vmem:[%s424 + $0xa0] sm:$0xff]
          %v1290 = vld [vmem:[%s424 + $0xa8] sm:$0xff]
          %v1291 = vld [vmem:[%s424 + $0xb0] sm:$0xff]
          %v1292 = vld [vmem:[%s424 + $0xb8] sm:$0xff]
          %v1293 = vld [vmem:[%s424 + $0xc0] sm:$0xff]
          %v1294 = vld [vmem:[%s424 + $0xc8] sm:$0xff]
          %v1295 = vld [vmem:[%s424 + $0xd0] sm:$0xff]
          %v1296 = vld [vmem:[%s424 + $0xd8] sm:$0xff]
          %v1297 = vld [vmem:[%s424 + $0xe0] sm:$0xff]
          %v1298 = vld [vmem:[%s424 + $0xe8] sm:$0xff]
          %v1299 = vld [vmem:[%s424 + $0xf0] sm:$0xff]
          %v1300 = vld [vmem:[%s424 + $0xf8] sm:$0xff]
          %1302 = vset.pattern.permute.xlu0 0
          %1303 = vperm.xlu0 %1302, %v1269
          %v1304 = vpop.permute.xlu0 %1303
          %1307 = vset.pattern.permute.xlu0 0
          %1308 = vperm.xlu0 %1307, %v1270
          %v1309 = vpop.permute.xlu0 %1308
          %1312 = vset.pattern.permute.xlu0 0
          %1313 = vperm.xlu0 %1312, %v1271
          %v1314 = vpop.permute.xlu0 %1313
          %1317 = vset.pattern.permute.xlu0 0
          %1318 = vperm.xlu0 %1317, %v1272
          %v1319 = vpop.permute.xlu0 %1318
          %1322 = vset.pattern.permute.xlu0 0
          %1323 = vperm.xlu0 %1322, %v1273
          %v1324 = vpop.permute.xlu0 %1323
          %1327 = vset.pattern.permute.xlu0 0
          %1328 = vperm.xlu0 %1327, %v1274
          %v1329 = vpop.permute.xlu0 %1328
          %1332 = vset.pattern.permute.xlu0 0
          %1333 = vperm.xlu0 %1332, %v1275
          %v1334 = vpop.permute.xlu0 %1333
          %1337 = vset.pattern.permute.xlu0 0
          %1338 = vperm.xlu0 %1337, %v1276
          %v1339 = vpop.permute.xlu0 %1338
          %1342 = vset.pattern.permute.xlu0 0
          %1343 = vperm.xlu0 %1342, %v1277
          %v1344 = vpop.permute.xlu0 %1343
          %1347 = vset.pattern.permute.xlu0 0
          %1348 = vperm.xlu0 %1347, %v1278
          %v1349 = vpop.permute.xlu0 %1348
          %1352 = vset.pattern.permute.xlu0 0
          %1353 = vperm.xlu0 %1352, %v1279
          %v1354 = vpop.permute.xlu0 %1353
          %1357 = vset.pattern.permute.xlu0 0
          %1358 = vperm.xlu0 %1357, %v1280
          %v1359 = vpop.permute.xlu0 %1358
          %1362 = vset.pattern.permute.xlu0 0
          %1363 = vperm.xlu0 %1362, %v1281
          %v1364 = vpop.permute.xlu0 %1363
          %1367 = vset.pattern.permute.xlu0 0
          %1368 = vperm.xlu0 %1367, %v1282
          %v1369 = vpop.permute.xlu0 %1368
          %1372 = vset.pattern.permute.xlu0 0
          %1373 = vperm.xlu0 %1372, %v1283
          %v1374 = vpop.permute.xlu0 %1373
          %1377 = vset.pattern.permute.xlu0 0
          %1378 = vperm.xlu0 %1377, %v1284
          %v1379 = vpop.permute.xlu0 %1378
          %1382 = vset.pattern.permute.xlu0 0
          %1383 = vperm.xlu0 %1382, %v1285
          %v1384 = vpop.permute.xlu0 %1383
          %1387 = vset.pattern.permute.xlu0 0
          %1388 = vperm.xlu0 %1387, %v1286
          %v1389 = vpop.permute.xlu0 %1388
          %1392 = vset.pattern.permute.xlu0 0
          %1393 = vperm.xlu0 %1392, %v1287
          %v1394 = vpop.permute.xlu0 %1393
          %1397 = vset.pattern.permute.xlu0 0
          %1398 = vperm.xlu0 %1397, %v1288
          %v1399 = vpop.permute.xlu0 %1398
          %1402 = vset.pattern.permute.xlu0 0
          %1403 = vperm.xlu0 %1402, %v1289
          %v1404 = vpop.permute.xlu0 %1403
          %1407 = vset.pattern.permute.xlu0 0
          %1408 = vperm.xlu0 %1407, %v1290
          %v1409 = vpop.permute.xlu0 %1408
          %1412 = vset.pattern.permute.xlu0 0
          %1413 = vperm.xlu0 %1412, %v1291
          %v1414 = vpop.permute.xlu0 %1413
          %1417 = vset.pattern.permute.xlu0 0
          %1418 = vperm.xlu0 %1417, %v1292
          %v1419 = vpop.permute.xlu0 %1418
          %1422 = vset.pattern.permute.xlu0 0
          %1423 = vperm.xlu0 %1422, %v1293
          %v1424 = vpop.permute.xlu0 %1423
          %1427 = vset.pattern.permute.xlu0 0
          %1428 = vperm.xlu0 %1427, %v1294
          %v1429 = vpop.permute.xlu0 %1428
          %1432 = vset.pattern.permute.xlu0 0
          %1433 = vperm.xlu0 %1432, %v1295
          %v1434 = vpop.permute.xlu0 %1433
          %1437 = vset.pattern.permute.xlu0 0
          %1438 = vperm.xlu0 %1437, %v1296
          %v1439 = vpop.permute.xlu0 %1438
          %1442 = vset.pattern.permute.xlu0 0
          %1443 = vperm.xlu0 %1442, %v1297
          %v1444 = vpop.permute.xlu0 %1443
          %1447 = vset.pattern.permute.xlu0 0
          %1448 = vperm.xlu0 %1447, %v1298
          %v1449 = vpop.permute.xlu0 %1448
          %1452 = vset.pattern.permute.xlu0 0
          %1453 = vperm.xlu0 %1452, %v1299
          %v1454 = vpop.permute.xlu0 %1453
          %1457 = vset.pattern.permute.xlu0 0
          %1458 = vperm.xlu0 %1457, %v1300
          %v1459 = vpop.permute.xlu0 %1458
          %v1461 = vmul.f32 %v1237, %v1304
          %v1462 = vmul.f32 %v1238, %v1309
          %v1463 = vmul.f32 %v1239, %v1314
          %v1464 = vmul.f32 %v1240, %v1319
          %v1465 = vmul.f32 %v1241, %v1324
          %v1466 = vmul.f32 %v1242, %v1329
          %v1467 = vmul.f32 %v1243, %v1334
          %v1468 = vmul.f32 %v1244, %v1339
          %v1469 = vmul.f32 %v1245, %v1344
          %v1470 = vmul.f32 %v1246, %v1349
          %v1471 = vmul.f32 %v1247, %v1354
          %v1472 = vmul.f32 %v1248, %v1359
          %v1473 = vmul.f32 %v1249, %v1364
          %v1474 = vmul.f32 %v1250, %v1369
          %v1475 = vmul.f32 %v1251, %v1374
          %v1476 = vmul.f32 %v1252, %v1379
          %v1477 = vmul.f32 %v1253, %v1384
          %v1478 = vmul.f32 %v1254, %v1389
          %v1479 = vmul.f32 %v1255, %v1394
          %v1480 = vmul.f32 %v1256, %v1399
          %v1481 = vmul.f32 %v1257, %v1404
          %v1482 = vmul.f32 %v1258, %v1409
          %v1483 = vmul.f32 %v1259, %v1414
          %v1484 = vmul.f32 %v1260, %v1419
          %v1485 = vmul.f32 %v1261, %v1424
          %v1486 = vmul.f32 %v1262, %v1429
          %v1487 = vmul.f32 %v1263, %v1434
          %v1488 = vmul.f32 %v1264, %v1439
          %v1489 = vmul.f32 %v1265, %v1444
          %v1490 = vmul.f32 %v1266, %v1449
          %v1491 = vmul.f32 %v1267, %v1454
          %v1492 = vmul.f32 %v1268, %v1459
          %v1493 = vpack.c.bf16 %v1462, %v1461
          %v1494 = vpack.c.bf16 %v1464, %v1463
          %v1495 = vpack.c.bf16 %v1466, %v1465
          %v1496 = vpack.c.bf16 %v1468, %v1467
          %v1497 = vpack.c.bf16 %v1470, %v1469
          %v1498 = vpack.c.bf16 %v1472, %v1471
          %v1499 = vpack.c.bf16 %v1474, %v1473
          %v1500 = vpack.c.bf16 %v1476, %v1475
          %v1501 = vpack.c.bf16 %v1478, %v1477
          %v1502 = vpack.c.bf16 %v1480, %v1479
          %v1503 = vpack.c.bf16 %v1482, %v1481
          %v1504 = vpack.c.bf16 %v1484, %v1483
          %v1505 = vpack.c.bf16 %v1486, %v1485
          %v1506 = vpack.c.bf16 %v1488, %v1487
          %v1507 = vpack.c.bf16 %v1490, %v1489
          %v1508 = vpack.c.bf16 %v1492, %v1491
          %v1509 = vld [vmem:[#allocation8] sm:$0xf]
          %v1510 = vld [vmem:[#allocation8 + $0x4] sm:$0xf]
          %v1511 = vld [vmem:[#allocation8 + $0x8] sm:$0xf]
          %v1512 = vld [vmem:[#allocation8 + $0xc] sm:$0xf]
          %v1513 = vld [vmem:[#allocation8 + $0x10] sm:$0xf]
          %v1514 = vld [vmem:[#allocation8 + $0x14] sm:$0xf]
          %v1515 = vld [vmem:[#allocation8 + $0x18] sm:$0xf]
          %v1516 = vld [vmem:[#allocation8 + $0x1c] sm:$0xf]
          %v1517 = vld [vmem:[#allocation8 + $0x20] sm:$0xf]
          %v1518 = vld [vmem:[#allocation8 + $0x24] sm:$0xf]
          %v1519 = vld [vmem:[#allocation8 + $0x28] sm:$0xf]
          %v1520 = vld [vmem:[#allocation8 + $0x2c] sm:$0xf]
          %v1521 = vld [vmem:[#allocation8 + $0x30] sm:$0xf]
          %v1522 = vld [vmem:[#allocation8 + $0x34] sm:$0xf]
          %v1523 = vld [vmem:[#allocation8 + $0x38] sm:$0xf]
          %v1524 = vld [vmem:[#allocation8 + $0x3c] sm:$0xf]
          %v1525 = vld [vmem:[%s352] sm:$0xf]
          %v1526 = vld [vmem:[%s352 + $0x4] sm:$0xf]
          %v1527 = vld [vmem:[%s352 + $0x8] sm:$0xf]
          %v1528 = vld [vmem:[%s352 + $0xc] sm:$0xf]
          %v1529 = vld [vmem:[%s352 + $0x10] sm:$0xf]
          %v1530 = vld [vmem:[%s352 + $0x14] sm:$0xf]
          %v1531 = vld [vmem:[%s352 + $0x18] sm:$0xf]
          %v1532 = vld [vmem:[%s352 + $0x1c] sm:$0xf]
          %v1533 = vld [vmem:[%s352 + $0x20] sm:$0xf]
          %v1534 = vld [vmem:[%s352 + $0x24] sm:$0xf]
          %v1535 = vld [vmem:[%s352 + $0x28] sm:$0xf]
          %v1536 = vld [vmem:[%s352 + $0x2c] sm:$0xf]
          %v1537 = vld [vmem:[%s352 + $0x30] sm:$0xf]
          %v1538 = vld [vmem:[%s352 + $0x34] sm:$0xf]
          %v1539 = vld [vmem:[%s352 + $0x38] sm:$0xf]
          %v1540 = vld [vmem:[%s352 + $0x3c] sm:$0xf]
          %v1541 = vld [vmem:[%s352 + $0x40] sm:$0xf]
          %v1542 = vld [vmem:[%s352 + $0x44] sm:$0xf]
          %v1543 = vld [vmem:[%s352 + $0x48] sm:$0xf]
          %v1544 = vld [vmem:[%s352 + $0x4c] sm:$0xf]
          %v1545 = vld [vmem:[%s352 + $0x50] sm:$0xf]
          %v1546 = vld [vmem:[%s352 + $0x54] sm:$0xf]
          %v1547 = vld [vmem:[%s352 + $0x58] sm:$0xf]
          %v1548 = vld [vmem:[%s352 + $0x5c] sm:$0xf]
          %v1549 = vld [vmem:[%s352 + $0x60] sm:$0xf]
          %v1550 = vld [vmem:[%s352 + $0x64] sm:$0xf]
          %v1551 = vld [vmem:[%s352 + $0x68] sm:$0xf]
          %v1552 = vld [vmem:[%s352 + $0x6c] sm:$0xf]
          %v1553 = vld [vmem:[%s352 + $0x70] sm:$0xf]
          %v1554 = vld [vmem:[%s352 + $0x74] sm:$0xf]
          %v1555 = vld [vmem:[%s352 + $0x78] sm:$0xf]
          %v1556 = vld [vmem:[%s352 + $0x7c] sm:$0xf]
          %v1557 = vld [vmem:[#allocation9] sm:$0xf]
          %v1558 = vld [vmem:[#allocation9 + $0x4] sm:$0xf]
          %v1559 = vld [vmem:[#allocation9 + $0x8] sm:$0xf]
          %v1560 = vld [vmem:[#allocation9 + $0xc] sm:$0xf]
          %v1561 = vld [vmem:[#allocation9 + $0x10] sm:$0xf]
          %v1562 = vld [vmem:[#allocation9 + $0x14] sm:$0xf]
          %v1563 = vld [vmem:[#allocation9 + $0x18] sm:$0xf]
          %v1564 = vld [vmem:[#allocation9 + $0x1c] sm:$0xf]
          %v1565 = vld [vmem:[#allocation9 + $0x20] sm:$0xf]
          %v1566 = vld [vmem:[#allocation9 + $0x24] sm:$0xf]
          %v1567 = vld [vmem:[#allocation9 + $0x28] sm:$0xf]
          %v1568 = vld [vmem:[#allocation9 + $0x2c] sm:$0xf]
          %v1569 = vld [vmem:[#allocation9 + $0x30] sm:$0xf]
          %v1570 = vld [vmem:[#allocation9 + $0x34] sm:$0xf]
          %v1571 = vld [vmem:[#allocation9 + $0x38] sm:$0xf]
          %v1572 = vld [vmem:[#allocation9 + $0x3c] sm:$0xf]
          %v1605 = vunpack.c.l.b16 %v1525
          %v1606 = vunpack.c.l.b16 %v1526
          %v1607 = vunpack.c.l.b16 %v1527
          %v1608 = vunpack.c.l.b16 %v1528
          %v1609 = vunpack.c.l.b16 %v1529
          %v1610 = vunpack.c.l.b16 %v1530
          %v1611 = vunpack.c.l.b16 %v1531
          %v1612 = vunpack.c.l.b16 %v1532
          %v1613 = vunpack.c.l.b16 %v1533
          %v1614 = vunpack.c.l.b16 %v1534
          %v1615 = vunpack.c.l.b16 %v1535
          %v1616 = vunpack.c.l.b16 %v1536
          %v1617 = vunpack.c.l.b16 %v1537
          %v1618 = vunpack.c.l.b16 %v1538
          %v1619 = vunpack.c.l.b16 %v1539
          %v1620 = vunpack.c.l.b16 %v1540
          %v1621 = vunpack.c.l.b16 %v1541
          %v1622 = vunpack.c.l.b16 %v1542
          %v1623 = vunpack.c.l.b16 %v1543
          %v1624 = vunpack.c.l.b16 %v1544
          %v1625 = vunpack.c.l.b16 %v1545
          %v1626 = vunpack.c.l.b16 %v1546
          %v1627 = vunpack.c.l.b16 %v1547
          %v1628 = vunpack.c.l.b16 %v1548
          %v1629 = vunpack.c.l.b16 %v1549
          %v1630 = vunpack.c.l.b16 %v1550
          %v1631 = vunpack.c.l.b16 %v1551
          %v1632 = vunpack.c.l.b16 %v1552
          %v1633 = vunpack.c.l.b16 %v1553
          %v1634 = vunpack.c.l.b16 %v1554
          %v1635 = vunpack.c.l.b16 %v1555
          %v1636 = vunpack.c.l.b16 %v1556
          %v1637 = vpack.c.b16 %v1606, %v1605
          %v1638 = vpack.c.b16 %v1608, %v1607
          %v1639 = vpack.c.b16 %v1610, %v1609
          %v1640 = vpack.c.b16 %v1612, %v1611
          %v1641 = vpack.c.b16 %v1614, %v1613
          %v1642 = vpack.c.b16 %v1616, %v1615
          %v1643 = vpack.c.b16 %v1618, %v1617
          %v1644 = vpack.c.b16 %v1620, %v1619
          %v1645 = vpack.c.b16 %v1622, %v1621
          %v1646 = vpack.c.b16 %v1624, %v1623
          %v1647 = vpack.c.b16 %v1626, %v1625
          %v1648 = vpack.c.b16 %v1628, %v1627
          %v1649 = vpack.c.b16 %v1630, %v1629
          %v1650 = vpack.c.b16 %v1632, %v1631
          %v1651 = vpack.c.b16 %v1634, %v1633
          %v1652 = vpack.c.b16 %v1636, %v1635
          %v1685 = vunpack.c.l.b16 %v1557
          %v1686 = vunpack.c.l.b16 %v1558
          %v1687 = vunpack.c.l.b16 %v1559
          %v1688 = vunpack.c.l.b16 %v1560
          %v1689 = vunpack.c.l.b16 %v1561
          %v1690 = vunpack.c.l.b16 %v1562
          %v1691 = vunpack.c.l.b16 %v1563
          %v1692 = vunpack.c.l.b16 %v1564
          %v1693 = vunpack.c.l.b16 %v1565
          %v1694 = vunpack.c.l.b16 %v1566
          %v1695 = vunpack.c.l.b16 %v1567
          %v1696 = vunpack.c.l.b16 %v1568
          %v1697 = vunpack.c.l.b16 %v1569
          %v1698 = vunpack.c.l.b16 %v1570
          %v1699 = vunpack.c.l.b16 %v1571
          %v1700 = vunpack.c.l.b16 %v1572
          %v1701 = vpack.c.b16 %v1686, %v1685
          %v1702 = vpack.c.b16 %v1688, %v1687
          %v1703 = vpack.c.b16 %v1690, %v1689
          %v1704 = vpack.c.b16 %v1692, %v1691
          %v1705 = vpack.c.b16 %v1694, %v1693
          %v1706 = vpack.c.b16 %v1696, %v1695
          %v1707 = vpack.c.b16 %v1698, %v1697
          %v1708 = vpack.c.b16 %v1700, %v1699
          %1717 = vmatprep.subr.bf16.mxu0 0
          %1718 = vmatpush1.bf16.msra.mxu0 %v1701
          %1719 = vmatprep.subr.bf16.mxu0 0
          %1720 = vmatpush1.bf16.msra.mxu0 %v1702
          %1721 = vmatprep.subr.bf16.mxu0 0
          %1722 = vmatpush1.bf16.msra.mxu0 %v1703
          %1723 = vmatprep.subr.bf16.mxu0 0
          %1724 = vmatpush1.bf16.msra.mxu0 %v1704
          %1725 = vmatprep.subr.bf16.mxu0 0
          %1726 = vmatpush1.bf16.msra.mxu0 %v1705
          %1727 = vmatprep.subr.bf16.mxu0 0
          %1728 = vmatpush1.bf16.msra.mxu0 %v1706
          %1729 = vmatprep.subr.bf16.mxu0 0
          %1730 = vmatpush1.bf16.msra.mxu0 %v1707
          %1731 = vmatprep.subr.bf16.mxu0 0
          %1732 = vmatpush1.bf16.msra.mxu0 %v1708
          %1733 = vmatprep.subr.bf16.mxu0 0
          %1734 = vmatpush1.bf16.msra.mxu0 0
          %1735 = vmatprep.subr.bf16.mxu0 0
          %1736 = vmatpush1.bf16.msra.mxu0 0
          %1737 = vmatprep.subr.bf16.mxu0 0
          %1738 = vmatpush1.bf16.msra.mxu0 0
          %1739 = vmatprep.subr.bf16.mxu0 0
          %1740 = vmatpush1.bf16.msra.mxu0 0
          %1741 = vmatprep.subr.bf16.mxu0 0
          %1742 = vmatpush1.bf16.msra.mxu0 0
          %1743 = vmatprep.subr.bf16.mxu0 0
          %1744 = vmatpush1.bf16.msra.mxu0 0
          %1745 = vmatprep.subr.bf16.mxu0 0
          %1746 = vmatpush1.bf16.msra.mxu0 0
          %1747 = vmatprep.subr.bf16.mxu0 0
          %1748 = vmatpush1.bf16.msra.mxu0 0
          %1749 = vmatprep.mubr.bf16.mxu0 0
          %1750 = vmatmul.mubr.bf16.gmra.mrb[0].mxu0 %v1637
          %v1751 = vpop.f32.mrb[0].mxu0
          %v1752 = vadd.f32 0.0, %v1751
          %v1753 = vpop.f32.mrb[0].mxu0
          %v1754 = vpop.f32.mrb[0].mxu0
          %v1755 = vadd.f32 0.0, %v1754
          %v1756 = vpop.f32.mrb[0].mxu0
          %1757 = vmatprep.mubr.bf16.mxu0 0
          %1758 = vmatmul.mubr.bf16.gmra.mrb[0].mxu0 %v1638
          %v1759 = vpop.f32.mrb[0].mxu0
          %v1760 = vadd.f32 0.0, %v1759
          %v1761 = vpop.f32.mrb[0].mxu0
          %v1762 = vpop.f32.mrb[0].mxu0
          %v1763 = vadd.f32 0.0, %v1762
          %v1764 = vpop.f32.mrb[0].mxu0
          %1765 = vmatprep.mubr.bf16.mxu0 0
          %1766 = vmatmul.mubr.bf16.gmra.mrb[0].mxu0 %v1639
          %v1767 = vpop.f32.mrb[0].mxu0
          %v1768 = vadd.f32 0.0, %v1767
          %v1769 = vpop.f32.mrb[0].mxu0
          %v1770 = vpop.f32.mrb[0].mxu0
          %v1771 = vadd.f32 0.0, %v1770
          %v1772 = vpop.f32.mrb[0].mxu0
          %1773 = vmatprep.mubr.bf16.mxu0 0
          %1774 = vmatmul.mubr.bf16.gmra.mrb[0].mxu0 %v1640
          %v1775 = vpop.f32.mrb[0].mxu0
          %v1776 = vadd.f32 0.0, %v1775
          %v1777 = vpop.f32.mrb[0].mxu0
          %v1778 = vpop.f32.mrb[0].mxu0
          %v1779 = vadd.f32 0.0, %v1778
          %v1780 = vpop.f32.mrb[0].mxu0
          %1781 = vmatprep.mubr.bf16.mxu0 0
          %1782 = vmatmul.mubr.bf16.gmra.mrb[0].mxu0 %v1641
          %v1783 = vpop.f32.mrb[0].mxu0
          %v1784 = vadd.f32 0.0, %v1783
          %v1785 = vpop.f32.mrb[0].mxu0
          %v1786 = vpop.f32.mrb[0].mxu0
          %v1787 = vadd.f32 0.0, %v1786
          %v1788 = vpop.f32.mrb[0].mxu0
          %1789 = vmatprep.mubr.bf16.mxu0 0
          %1790 = vmatmul.mubr.bf16.gmra.mrb[0].mxu0 %v1642
          %v1791 = vpop.f32.mrb[0].mxu0
          %v1792 = vadd.f32 0.0, %v1791
          %v1793 = vpop.f32.mrb[0].mxu0
          %v1794 = vpop.f32.mrb[0].mxu0
          %v1795 = vadd.f32 0.0, %v1794
          %v1796 = vpop.f32.mrb[0].mxu0
          %1797 = vmatprep.mubr.bf16.mxu0 0
          %1798 = vmatmul.mubr.bf16.gmra.mrb[0].mxu0 %v1643
          %v1799 = vpop.f32.mrb[0].mxu0
          %v1800 = vadd.f32 0.0, %v1799
          %v1801 = vpop.f32.mrb[0].mxu0
          %v1802 = vpop.f32.mrb[0].mxu0
          %v1803 = vadd.f32 0.0, %v1802
          %v1804 = vpop.f32.mrb[0].mxu0
          %1805 = vmatprep.mubr.bf16.mxu0 0
          %1806 = vmatmul.mubr.bf16.gmra.mrb[0].mxu0 %v1644
          %v1807 = vpop.f32.mrb[0].mxu0
          %v1808 = vadd.f32 0.0, %v1807
          %v1809 = vpop.f32.mrb[0].mxu0
          %v1810 = vpop.f32.mrb[0].mxu0
          %v1811 = vadd.f32 0.0, %v1810
          %v1812 = vpop.f32.mrb[0].mxu0
          %1813 = vmatprep.mubr.bf16.mxu0 0
          %1814 = vmatmul.mubr.bf16.gmra.mrb[0].mxu0 %v1645
          %v1815 = vpop.f32.mrb[0].mxu0
          %v1816 = vadd.f32 0.0, %v1815
          %v1817 = vpop.f32.mrb[0].mxu0
          %v1818 = vpop.f32.mrb[0].mxu0
          %v1819 = vadd.f32 0.0, %v1818
          %v1820 = vpop.f32.mrb[0].mxu0
          %1821 = vmatprep.mubr.bf16.mxu0 0
          %1822 = vmatmul.mubr.bf16.gmra.mrb[0].mxu0 %v1646
          %v1823 = vpop.f32.mrb[0].mxu0
          %v1824 = vadd.f32 0.0, %v1823
          %v1825 = vpop.f32.mrb[0].mxu0
          %v1826 = vpop.f32.mrb[0].mxu0
          %v1827 = vadd.f32 0.0, %v1826
          %v1828 = vpop.f32.mrb[0].mxu0
          %1829 = vmatprep.mubr.bf16.mxu0 0
          %1830 = vmatmul.mubr.bf16.gmra.mrb[0].mxu0 %v1647
          %v1831 = vpop.f32.mrb[0].mxu0
          %v1832 = vadd.f32 0.0, %v1831
          %v1833 = vpop.f32.mrb[0].mxu0
          %v1834 = vpop.f32.mrb[0].mxu0
          %v1835 = vadd.f32 0.0, %v1834
          %v1836 = vpop.f32.mrb[0].mxu0
          %1837 = vmatprep.mubr.bf16.mxu0 0
          %1838 = vmatmul.mubr.bf16.gmra.mrb[0].mxu0 %v1648
          %v1839 = vpop.f32.mrb[0].mxu0
          %v1840 = vadd.f32 0.0, %v1839
          %v1841 = vpop.f32.mrb[0].mxu0
          %v1842 = vpop.f32.mrb[0].mxu0
          %v1843 = vadd.f32 0.0, %v1842
          %v1844 = vpop.f32.mrb[0].mxu0
          %1845 = vmatprep.mubr.bf16.mxu0 0
          %1846 = vmatmul.mubr.bf16.gmra.mrb[0].mxu0 %v1649
          %v1847 = vpop.f32.mrb[0].mxu0
          %v1848 = vadd.f32 0.0, %v1847
          %v1849 = vpop.f32.mrb[0].mxu0
          %v1850 = vpop.f32.mrb[0].mxu0
          %v1851 = vadd.f32 0.0, %v1850
          %v1852 = vpop.f32.mrb[0].mxu0
          %1853 = vmatprep.mubr.bf16.mxu0 0
          %1854 = vmatmul.mubr.bf16.gmra.mrb[0].mxu0 %v1650
          %v1855 = vpop.f32.mrb[0].mxu0
          %v1856 = vadd.f32 0.0, %v1855
          %v1857 = vpop.f32.mrb[0].mxu0
          %v1858 = vpop.f32.mrb[0].mxu0
          %v1859 = vadd.f32 0.0, %v1858
          %v1860 = vpop.f32.mrb[0].mxu0
          %1861 = vmatprep.mubr.bf16.mxu0 0
          %1862 = vmatmul.mubr.bf16.gmra.mrb[0].mxu0 %v1651
          %v1863 = vpop.f32.mrb[0].mxu0
          %v1864 = vadd.f32 0.0, %v1863
          %v1865 = vpop.f32.mrb[0].mxu0
          %v1866 = vpop.f32.mrb[0].mxu0
          %v1867 = vadd.f32 0.0, %v1866
          %v1868 = vpop.f32.mrb[0].mxu0
          %1869 = vmatprep.mubr.bf16.mxu0 0
          %1870 = vmatmul.mubr.bf16.gmra.mrb[0].mxu0 %v1652
          %v1871 = vpop.f32.mrb[0].mxu0
          %v1872 = vadd.f32 0.0, %v1871
          %v1873 = vpop.f32.mrb[0].mxu0
          %v1874 = vpop.f32.mrb[0].mxu0
          %v1875 = vadd.f32 0.0, %v1874
          %v1876 = vpop.f32.mrb[0].mxu0
          %1877 = vdwg.mxu0
          %v1894 = vunpack.c.l.b16 %v1509
          %v1895 = vunpack.c.l.b16 %v1510
          %v1896 = vunpack.c.l.b16 %v1511
          %v1897 = vunpack.c.l.b16 %v1512
          %v1898 = vunpack.c.l.b16 %v1513
          %v1899 = vunpack.c.l.b16 %v1514
          %v1900 = vunpack.c.l.b16 %v1515
          %v1901 = vunpack.c.l.b16 %v1516
          %v1902 = vunpack.c.l.b16 %v1517
          %v1903 = vunpack.c.l.b16 %v1518
          %v1904 = vunpack.c.l.b16 %v1519
          %v1905 = vunpack.c.l.b16 %v1520
          %v1906 = vunpack.c.l.b16 %v1521
          %v1907 = vunpack.c.l.b16 %v1522
          %v1908 = vunpack.c.l.b16 %v1523
          %v1909 = vunpack.c.l.b16 %v1524
          %v1910 = vpack.c.b16 %v1895, %v1894
          %v1911 = vpack.c.b16 %v1897, %v1896
          %v1912 = vpack.c.b16 %v1899, %v1898
          %v1913 = vpack.c.b16 %v1901, %v1900
          %v1914 = vpack.c.b16 %v1903, %v1902
          %v1915 = vpack.c.b16 %v1905, %v1904
          %v1916 = vpack.c.b16 %v1907, %v1906
          %v1917 = vpack.c.b16 %v1909, %v1908
          %1926 = vmatprep.subr.bf16.mxu0 0
          %1927 = vmatpush1.bf16.msra.mxu0 %v1910
          %1928 = vmatprep.subr.bf16.mxu0 0
          %1929 = vmatpush1.bf16.msra.mxu0 %v1911
          %1930 = vmatprep.subr.bf16.mxu0 0
          %1931 = vmatpush1.bf16.msra.mxu0 %v1912
          %1932 = vmatprep.subr.bf16.mxu0 0
          %1933 = vmatpush1.bf16.msra.mxu0 %v1913
          %1934 = vmatprep.subr.bf16.mxu0 0
          %1935 = vmatpush1.bf16.msra.mxu0 %v1914
          %1936 = vmatprep.subr.bf16.mxu0 0
          %1937 = vmatpush1.bf16.msra.mxu0 %v1915
          %1938 = vmatprep.subr.bf16.mxu0 0
          %1939 = vmatpush1.bf16.msra.mxu0 %v1916
          %1940 = vmatprep.subr.bf16.mxu0 0
          %1941 = vmatpush1.bf16.msra.mxu0 %v1917
          %1942 = vmatprep.subr.bf16.mxu0 0
          %1943 = vmatpush1.bf16.msra.mxu0 0
          %1944 = vmatprep.subr.bf16.mxu0 0
          %1945 = vmatpush1.bf16.msra.mxu0 0
          %1946 = vmatprep.subr.bf16.mxu0 0
          %1947 = vmatpush1.bf16.msra.mxu0 0
          %1948 = vmatprep.subr.bf16.mxu0 0
          %1949 = vmatpush1.bf16.msra.mxu0 0
          %1950 = vmatprep.subr.bf16.mxu0 0
          %1951 = vmatpush1.bf16.msra.mxu0 0
          %1952 = vmatprep.subr.bf16.mxu0 0
          %1953 = vmatpush1.bf16.msra.mxu0 0
          %1954 = vmatprep.subr.bf16.mxu0 0
          %1955 = vmatpush1.bf16.msra.mxu0 0
          %1956 = vmatprep.subr.bf16.mxu0 0
          %1957 = vmatpush1.bf16.msra.mxu0 0
          %1958 = vmatprep.mubr.bf16.mxu0 0
          %1959 = vmatmul.mubr.bf16.gmra.mrb[0].mxu0 %v1493
          %v1960 = vpop.f32.mrb[0].mxu0
          %v1961 = vadd.f32 %v1752, %v1960
          %v1962 = vpop.f32.mrb[0].mxu0
          %v1963 = vpop.f32.mrb[0].mxu0
          %v1964 = vadd.f32 %v1755, %v1963
          %v1965 = vpop.f32.mrb[0].mxu0
          %1966 = vmatprep.mubr.bf16.mxu0 0
          %1967 = vmatmul.mubr.bf16.gmra.mrb[0].mxu0 %v1494
          %v1968 = vpop.f32.mrb[0].mxu0
          %v1969 = vadd.f32 %v1760, %v1968
          %v1970 = vpop.f32.mrb[0].mxu0
          %v1971 = vpop.f32.mrb[0].mxu0
          %v1972 = vadd.f32 %v1763, %v1971
          %v1973 = vpop.f32.mrb[0].mxu0
          %1974 = vmatprep.mubr.bf16.mxu0 0
          %1975 = vmatmul.mubr.bf16.gmra.mrb[0].mxu0 %v1495
          %v1976 = vpop.f32.mrb[0].mxu0
          %v1977 = vadd.f32 %v1768, %v1976
          %v1978 = vpop.f32.mrb[0].mxu0
          %v1979 = vpop.f32.mrb[0].mxu0
          %v1980 = vadd.f32 %v1771, %v1979
          %v1981 = vpop.f32.mrb[0].mxu0
          %1982 = vmatprep.mubr.bf16.mxu0 0
          %1983 = vmatmul.mubr.bf16.gmra.mrb[0].mxu0 %v1496
          %v1984 = vpop.f32.mrb[0].mxu0
          %v1985 = vadd.f32 %v1776, %v1984
          %v1986 = vpop.f32.mrb[0].mxu0
          %v1987 = vpop.f32.mrb[0].mxu0
          %v1988 = vadd.f32 %v1779, %v1987
          %v1989 = vpop.f32.mrb[0].mxu0
          %1990 = vmatprep.mubr.bf16.mxu0 0
          %1991 = vmatmul.mubr.bf16.gmra.mrb[0].mxu0 %v1497
          %v1992 = vpop.f32.mrb[0].mxu0
          %v1993 = vadd.f32 %v1784, %v1992
          %v1994 = vpop.f32.mrb[0].mxu0
          %v1995 = vpop.f32.mrb[0].mxu0
          %v1996 = vadd.f32 %v1787, %v1995
          %v1997 = vpop.f32.mrb[0].mxu0
          %1998 = vmatprep.mubr.bf16.mxu0 0
          %1999 = vmatmul.mubr.bf16.gmra.mrb[0].mxu0 %v1498
          %v2000 = vpop.f32.mrb[0].mxu0
          %v2001 = vadd.f32 %v1792, %v2000
          %v2002 = vpop.f32.mrb[0].mxu0
          %v2003 = vpop.f32.mrb[0].mxu0
          %v2004 = vadd.f32 %v1795, %v2003
          %v2005 = vpop.f32.mrb[0].mxu0
          %2006 = vmatprep.mubr.bf16.mxu0 0
          %2007 = vmatmul.mubr.bf16.gmra.mrb[0].mxu0 %v1499
          %v2008 = vpop.f32.mrb[0].mxu0
          %v2009 = vadd.f32 %v1800, %v2008
          %v2010 = vpop.f32.mrb[0].mxu0
          %v2011 = vpop.f32.mrb[0].mxu0
          %v2012 = vadd.f32 %v1803, %v2011
          %v2013 = vpop.f32.mrb[0].mxu0
          %2014 = vmatprep.mubr.bf16.mxu0 0
          %2015 = vmatmul.mubr.bf16.gmra.mrb[0].mxu0 %v1500
          %v2016 = vpop.f32.mrb[0].mxu0
          %v2017 = vadd.f32 %v1808, %v2016
          %v2018 = vpop.f32.mrb[0].mxu0
          %v2019 = vpop.f32.mrb[0].mxu0
          %v2020 = vadd.f32 %v1811, %v2019
          %v2021 = vpop.f32.mrb[0].mxu0
          %2022 = vmatprep.mubr.bf16.mxu0 0
          %2023 = vmatmul.mubr.bf16.gmra.mrb[0].mxu0 %v1501
          %v2024 = vpop.f32.mrb[0].mxu0
          %v2025 = vadd.f32 %v1816, %v2024
          %v2026 = vpop.f32.mrb[0].mxu0
          %v2027 = vpop.f32.mrb[0].mxu0
          %v2028 = vadd.f32 %v1819, %v2027
          %v2029 = vpop.f32.mrb[0].mxu0
          %2030 = vmatprep.mubr.bf16.mxu0 0
          %2031 = vmatmul.mubr.bf16.gmra.mrb[0].mxu0 %v1502
          %v2032 = vpop.f32.mrb[0].mxu0
          %v2033 = vadd.f32 %v1824, %v2032
          %v2034 = vpop.f32.mrb[0].mxu0
          %v2035 = vpop.f32.mrb[0].mxu0
          %v2036 = vadd.f32 %v1827, %v2035
          %v2037 = vpop.f32.mrb[0].mxu0
          %2038 = vmatprep.mubr.bf16.mxu0 0
          %2039 = vmatmul.mubr.bf16.gmra.mrb[0].mxu0 %v1503
          %v2040 = vpop.f32.mrb[0].mxu0
          %v2041 = vadd.f32 %v1832, %v2040
          %v2042 = vpop.f32.mrb[0].mxu0
          %v2043 = vpop.f32.mrb[0].mxu0
          %v2044 = vadd.f32 %v1835, %v2043
          %v2045 = vpop.f32.mrb[0].mxu0
          %2046 = vmatprep.mubr.bf16.mxu0 0
          %2047 = vmatmul.mubr.bf16.gmra.mrb[0].mxu0 %v1504
          %v2048 = vpop.f32.mrb[0].mxu0
          %v2049 = vadd.f32 %v1840, %v2048
          %v2050 = vpop.f32.mrb[0].mxu0
          %v2051 = vpop.f32.mrb[0].mxu0
          %v2052 = vadd.f32 %v1843, %v2051
          %v2053 = vpop.f32.mrb[0].mxu0
          %2054 = vmatprep.mubr.bf16.mxu0 0
          %2055 = vmatmul.mubr.bf16.gmra.mrb[0].mxu0 %v1505
          %v2056 = vpop.f32.mrb[0].mxu0
          %v2057 = vadd.f32 %v1848, %v2056
          %v2058 = vpop.f32.mrb[0].mxu0
          %v2059 = vpop.f32.mrb[0].mxu0
          %v2060 = vadd.f32 %v1851, %v2059
          %v2061 = vpop.f32.mrb[0].mxu0
          %2062 = vmatprep.mubr.bf16.mxu0 0
          %2063 = vmatmul.mubr.bf16.gmra.mrb[0].mxu0 %v1506
          %v2064 = vpop.f32.mrb[0].mxu0
          %v2065 = vadd.f32 %v1856, %v2064
          %v2066 = vpop.f32.mrb[0].mxu0
          %v2067 = vpop.f32.mrb[0].mxu0
          %v2068 = vadd.f32 %v1859, %v2067
          %v2069 = vpop.f32.mrb[0].mxu0
          %2070 = vmatprep.mubr.bf16.mxu0 0
          %2071 = vmatmul.mubr.bf16.gmra.mrb[0].mxu0 %v1507
          %v2072 = vpop.f32.mrb[0].mxu0
          %v2073 = vadd.f32 %v1864, %v2072
          %v2074 = vpop.f32.mrb[0].mxu0
          %v2075 = vpop.f32.mrb[0].mxu0
          %v2076 = vadd.f32 %v1867, %v2075
          %v2077 = vpop.f32.mrb[0].mxu0
          %2078 = vmatprep.mubr.bf16.mxu0 0
          %2079 = vmatmul.mubr.bf16.gmra.mrb[0].mxu0 %v1508
          %v2080 = vpop.f32.mrb[0].mxu0
          %v2081 = vadd.f32 %v1872, %v2080
          %v2082 = vpop.f32.mrb[0].mxu0
          %v2083 = vpop.f32.mrb[0].mxu0
          %v2084 = vadd.f32 %v1875, %v2083
          %v2085 = vpop.f32.mrb[0].mxu0
          %2086 = vdwg.mxu0
          %v2087 = vld [vmem:[%s6] sm:$0x1]
          %v2089 = vlaneseq
          %v2090 = vshrl.u32 %v2089, 7
          %v2091 = vsub.s32 0, %v2090
          %v2092 = vrot.slane %v2087, %v2091
          %v2094 = vadd.f32 %v1961, %v2092
          %v2095 = vadd.f32 %v1964, %v2092
          %v2096 = vadd.f32 %v1969, %v2092
          %v2097 = vadd.f32 %v1972, %v2092
          %v2098 = vadd.f32 %v1977, %v2092
          %v2099 = vadd.f32 %v1980, %v2092
          %v2100 = vadd.f32 %v1985, %v2092
          %v2101 = vadd.f32 %v1988, %v2092
          %v2102 = vadd.f32 %v1993, %v2092
          %v2103 = vadd.f32 %v1996, %v2092
          %v2104 = vadd.f32 %v2001, %v2092
          %v2105 = vadd.f32 %v2004, %v2092
          %v2106 = vadd.f32 %v2009, %v2092
          %v2107 = vadd.f32 %v2012, %v2092
          %v2108 = vadd.f32 %v2017, %v2092
          %v2109 = vadd.f32 %v2020, %v2092
          %v2110 = vadd.f32 %v2025, %v2092
          %v2111 = vadd.f32 %v2028, %v2092
          %v2112 = vadd.f32 %v2033, %v2092
          %v2113 = vadd.f32 %v2036, %v2092
          %v2114 = vadd.f32 %v2041, %v2092
          %v2115 = vadd.f32 %v2044, %v2092
          %v2116 = vadd.f32 %v2049, %v2092
          %v2117 = vadd.f32 %v2052, %v2092
          %v2118 = vadd.f32 %v2057, %v2092
          %v2119 = vadd.f32 %v2060, %v2092
          %v2120 = vadd.f32 %v2065, %v2092
          %v2121 = vadd.f32 %v2068, %v2092
          %v2122 = vadd.f32 %v2073, %v2092
          %v2123 = vadd.f32 %v2076, %v2092
          %v2124 = vadd.f32 %v2081, %v2092
          %v2125 = vadd.f32 %v2084, %v2092
          %v2126 = vmul.f32 %v2094, %v2094
          %v2127 = vmul.f32 %v2095, %v2095
          %v2128 = vmul.f32 %v2096, %v2096
          %v2129 = vmul.f32 %v2097, %v2097
          %v2130 = vmul.f32 %v2098, %v2098
          %v2131 = vmul.f32 %v2099, %v2099
          %v2132 = vmul.f32 %v2100, %v2100
          %v2133 = vmul.f32 %v2101, %v2101
          %v2134 = vmul.f32 %v2102, %v2102
          %v2135 = vmul.f32 %v2103, %v2103
          %v2136 = vmul.f32 %v2104, %v2104
          %v2137 = vmul.f32 %v2105, %v2105
          %v2138 = vmul.f32 %v2106, %v2106
          %v2139 = vmul.f32 %v2107, %v2107
          %v2140 = vmul.f32 %v2108, %v2108
          %v2141 = vmul.f32 %v2109, %v2109
          %v2142 = vmul.f32 %v2110, %v2110
          %v2143 = vmul.f32 %v2111, %v2111
          %v2144 = vmul.f32 %v2112, %v2112
          %v2145 = vmul.f32 %v2113, %v2113
          %v2146 = vmul.f32 %v2114, %v2114
          %v2147 = vmul.f32 %v2115, %v2115
          %v2148 = vmul.f32 %v2116, %v2116
          %v2149 = vmul.f32 %v2117, %v2117
          %v2150 = vmul.f32 %v2118, %v2118
          %v2151 = vmul.f32 %v2119, %v2119
          %v2152 = vmul.f32 %v2120, %v2120
          %v2153 = vmul.f32 %v2121, %v2121
          %v2154 = vmul.f32 %v2122, %v2122
          %v2155 = vmul.f32 %v2123, %v2123
          %v2156 = vmul.f32 %v2124, %v2124
          %v2157 = vmul.f32 %v2125, %v2125
          %2158 = vadd.xlane.f32.xlu0 %v2126
          %v2159 = vpop.xlane.xlu0 %2158
          %2160 = vadd.xlane.f32.xlu0 %v2127
          %v2161 = vpop.xlane.xlu0 %2160
          %2162 = vadd.xlane.f32.xlu0 %v2128
          %v2163 = vpop.xlane.xlu0 %2162
          %2164 = vadd.xlane.f32.xlu0 %v2129
          %v2165 = vpop.xlane.xlu0 %2164
          %2166 = vadd.xlane.f32.xlu0 %v2130
          %v2167 = vpop.xlane.xlu0 %2166
          %2168 = vadd.xlane.f32.xlu0 %v2131
          %v2169 = vpop.xlane.xlu0 %2168
          %2170 = vadd.xlane.f32.xlu0 %v2132
          %v2171 = vpop.xlane.xlu0 %2170
          %2172 = vadd.xlane.f32.xlu0 %v2133
          %v2173 = vpop.xlane.xlu0 %2172
          %2174 = vadd.xlane.f32.xlu0 %v2134
          %v2175 = vpop.xlane.xlu0 %2174
          %2176 = vadd.xlane.f32.xlu0 %v2135
          %v2177 = vpop.xlane.xlu0 %2176
          %2178 = vadd.xlane.f32.xlu0 %v2136
          %v2179 = vpop.xlane.xlu0 %2178
          %2180 = vadd.xlane.f32.xlu0 %v2137
          %v2181 = vpop.xlane.xlu0 %2180
          %2182 = vadd.xlane.f32.xlu0 %v2138
          %v2183 = vpop.xlane.xlu0 %2182
          %2184 = vadd.xlane.f32.xlu0 %v2139
          %v2185 = vpop.xlane.xlu0 %2184
          %2186 = vadd.xlane.f32.xlu0 %v2140
          %v2187 = vpop.xlane.xlu0 %2186
          %2188 = vadd.xlane.f32.xlu0 %v2141
          %v2189 = vpop.xlane.xlu0 %2188
          %2190 = vadd.xlane.f32.xlu0 %v2142
          %v2191 = vpop.xlane.xlu0 %2190
          %2192 = vadd.xlane.f32.xlu0 %v2143
          %v2193 = vpop.xlane.xlu0 %2192
          %2194 = vadd.xlane.f32.xlu0 %v2144
          %v2195 = vpop.xlane.xlu0 %2194
          %2196 = vadd.xlane.f32.xlu0 %v2145
          %v2197 = vpop.xlane.xlu0 %2196
          %2198 = vadd.xlane.f32.xlu0 %v2146
          %v2199 = vpop.xlane.xlu0 %2198
          %2200 = vadd.xlane.f32.xlu0 %v2147
          %v2201 = vpop.xlane.xlu0 %2200
          %2202 = vadd.xlane.f32.xlu0 %v2148
          %v2203 = vpop.xlane.xlu0 %2202
          %2204 = vadd.xlane.f32.xlu0 %v2149
          %v2205 = vpop.xlane.xlu0 %2204
          %2206 = vadd.xlane.f32.xlu0 %v2150
          %v2207 = vpop.xlane.xlu0 %2206
          %2208 = vadd.xlane.f32.xlu0 %v2151
          %v2209 = vpop.xlane.xlu0 %2208
          %2210 = vadd.xlane.f32.xlu0 %v2152
          %v2211 = vpop.xlane.xlu0 %2210
          %2212 = vadd.xlane.f32.xlu0 %v2153
          %v2213 = vpop.xlane.xlu0 %2212
          %2214 = vadd.xlane.f32.xlu0 %v2154
          %v2215 = vpop.xlane.xlu0 %2214
          %2216 = vadd.xlane.f32.xlu0 %v2155
          %v2217 = vpop.xlane.xlu0 %2216
          %2218 = vadd.xlane.f32.xlu0 %v2156
          %v2219 = vpop.xlane.xlu0 %2218
          %2220 = vadd.xlane.f32.xlu0 %v2157
          %v2221 = vpop.xlane.xlu0 %2220
          %v2222 = vmax.f32 %v2159, 1e-24
          %v2223 = vmax.f32 %v2161, 1e-24
          %v2224 = vmax.f32 %v2163, 1e-24
          %v2225 = vmax.f32 %v2165, 1e-24
          %v2226 = vmax.f32 %v2167, 1e-24
          %v2227 = vmax.f32 %v2169, 1e-24
          %v2228 = vmax.f32 %v2171, 1e-24
          %v2229 = vmax.f32 %v2173, 1e-24
          %v2230 = vmax.f32 %v2175, 1e-24
          %v2231 = vmax.f32 %v2177, 1e-24
          %v2232 = vmax.f32 %v2179, 1e-24
          %v2233 = vmax.f32 %v2181, 1e-24
          %v2234 = vmax.f32 %v2183, 1e-24
          %v2235 = vmax.f32 %v2185, 1e-24
          %v2236 = vmax.f32 %v2187, 1e-24
          %v2237 = vmax.f32 %v2189, 1e-24
          %v2238 = vmax.f32 %v2191, 1e-24
          %v2239 = vmax.f32 %v2193, 1e-24
          %v2240 = vmax.f32 %v2195, 1e-24
          %v2241 = vmax.f32 %v2197, 1e-24
          %v2242 = vmax.f32 %v2199, 1e-24
          %v2243 = vmax.f32 %v2201, 1e-24
          %v2244 = vmax.f32 %v2203, 1e-24
          %v2245 = vmax.f32 %v2205, 1e-24
          %v2246 = vmax.f32 %v2207, 1e-24
          %v2247 = vmax.f32 %v2209, 1e-24
          %v2248 = vmax.f32 %v2211, 1e-24
          %v2249 = vmax.f32 %v2213, 1e-24
          %v2250 = vmax.f32 %v2215, 1e-24
          %v2251 = vmax.f32 %v2217, 1e-24
          %v2252 = vmax.f32 %v2219, 1e-24
          %v2253 = vmax.f32 %v2221, 1e-24
          %v2254 = vrsqrt.pop %v2222
          %v2255 = vrsqrt.pop %v2223
          %v2256 = vrsqrt.pop %v2224
          %v2257 = vrsqrt.pop %v2225
          %v2258 = vrsqrt.pop %v2226
          %v2259 = vrsqrt.pop %v2227
          %v2260 = vrsqrt.pop %v2228
          %v2261 = vrsqrt.pop %v2229
          %v2262 = vrsqrt.pop %v2230
          %v2263 = vrsqrt.pop %v2231
          %v2264 = vrsqrt.pop %v2232
          %v2265 = vrsqrt.pop %v2233
          %v2266 = vrsqrt.pop %v2234
          %v2267 = vrsqrt.pop %v2235
          %v2268 = vrsqrt.pop %v2236
          %v2269 = vrsqrt.pop %v2237
          %v2270 = vrsqrt.pop %v2238
          %v2271 = vrsqrt.pop %v2239
          %v2272 = vrsqrt.pop %v2240
          %v2273 = vrsqrt.pop %v2241
          %v2274 = vrsqrt.pop %v2242
          %v2275 = vrsqrt.pop %v2243
          %v2276 = vrsqrt.pop %v2244
          %v2277 = vrsqrt.pop %v2245
          %v2278 = vrsqrt.pop %v2246
          %v2279 = vrsqrt.pop %v2247
          %v2280 = vrsqrt.pop %v2248
          %v2281 = vrsqrt.pop %v2249
          %v2282 = vrsqrt.pop %v2250
          %v2283 = vrsqrt.pop %v2251
          %v2284 = vrsqrt.pop %v2252
          %v2285 = vrsqrt.pop %v2253
          %v2286 = vmul.f32 %v2094, %v2254
          %v2287 = vmul.f32 %v2095, %v2255
          %v2288 = vmul.f32 %v2096, %v2256
          %v2289 = vmul.f32 %v2097, %v2257
          %v2290 = vmul.f32 %v2098, %v2258
          %v2291 = vmul.f32 %v2099, %v2259
          %v2292 = vmul.f32 %v2100, %v2260
          %v2293 = vmul.f32 %v2101, %v2261
          %v2294 = vmul.f32 %v2102, %v2262
          %v2295 = vmul.f32 %v2103, %v2263
          %v2296 = vmul.f32 %v2104, %v2264
          %v2297 = vmul.f32 %v2105, %v2265
          %v2298 = vmul.f32 %v2106, %v2266
          %v2299 = vmul.f32 %v2107, %v2267
          %v2300 = vmul.f32 %v2108, %v2268
          %v2301 = vmul.f32 %v2109, %v2269
          %v2302 = vmul.f32 %v2110, %v2270
          %v2303 = vmul.f32 %v2111, %v2271
          %v2304 = vmul.f32 %v2112, %v2272
          %v2305 = vmul.f32 %v2113, %v2273
          %v2306 = vmul.f32 %v2114, %v2274
          %v2307 = vmul.f32 %v2115, %v2275
          %v2308 = vmul.f32 %v2116, %v2276
          %v2309 = vmul.f32 %v2117, %v2277
          %v2310 = vmul.f32 %v2118, %v2278
          %v2311 = vmul.f32 %v2119, %v2279
          %v2312 = vmul.f32 %v2120, %v2280
          %v2313 = vmul.f32 %v2121, %v2281
          %v2314 = vmul.f32 %v2122, %v2282
          %v2315 = vmul.f32 %v2123, %v2283
          %v2316 = vmul.f32 %v2124, %v2284
          %v2317 = vmul.f32 %v2125, %v2285
          %v2318 = vmax.f32 %v2286, 0.0
          %v2319 = vmax.f32 %v2287, 0.0
          %v2320 = vmax.f32 %v2288, 0.0
          %v2321 = vmax.f32 %v2289, 0.0
          %v2322 = vmax.f32 %v2290, 0.0
          %v2323 = vmax.f32 %v2291, 0.0
          %v2324 = vmax.f32 %v2292, 0.0
          %v2325 = vmax.f32 %v2293, 0.0
          %v2326 = vmax.f32 %v2294, 0.0
          %v2327 = vmax.f32 %v2295, 0.0
          %v2328 = vmax.f32 %v2296, 0.0
          %v2329 = vmax.f32 %v2297, 0.0
          %v2330 = vmax.f32 %v2298, 0.0
          %v2331 = vmax.f32 %v2299, 0.0
          %v2332 = vmax.f32 %v2300, 0.0
          %v2333 = vmax.f32 %v2301, 0.0
          %v2334 = vmax.f32 %v2302, 0.0
          %v2335 = vmax.f32 %v2303, 0.0
          %v2336 = vmax.f32 %v2304, 0.0
          %v2337 = vmax.f32 %v2305, 0.0
          %v2338 = vmax.f32 %v2306, 0.0
          %v2339 = vmax.f32 %v2307, 0.0
          %v2340 = vmax.f32 %v2308, 0.0
          %v2341 = vmax.f32 %v2309, 0.0
          %v2342 = vmax.f32 %v2310, 0.0
          %v2343 = vmax.f32 %v2311, 0.0
          %v2344 = vmax.f32 %v2312, 0.0
          %v2345 = vmax.f32 %v2313, 0.0
          %v2346 = vmax.f32 %v2314, 0.0
          %v2347 = vmax.f32 %v2315, 0.0
          %v2348 = vmax.f32 %v2316, 0.0
          %v2349 = vmax.f32 %v2317, 0.0
          %2350 = vst [vmem:[%s405] sm:$0xff] %v2318
          %2351 = vst [vmem:[%s405 + $0x8] sm:$0xff] %v2319
          %2352 = vst [vmem:[%s405 + $0x10] sm:$0xff] %v2320
          %2353 = vst [vmem:[%s405 + $0x18] sm:$0xff] %v2321
          %2354 = vst [vmem:[%s405 + $0x20] sm:$0xff] %v2322
          %2355 = vst [vmem:[%s405 + $0x28] sm:$0xff] %v2323
          %2356 = vst [vmem:[%s405 + $0x30] sm:$0xff] %v2324
          %2357 = vst [vmem:[%s405 + $0x38] sm:$0xff] %v2325
          %2358 = vst [vmem:[%s405 + $0x40] sm:$0xff] %v2326
          %2359 = vst [vmem:[%s405 + $0x48] sm:$0xff] %v2327
          %2360 = vst [vmem:[%s405 + $0x50] sm:$0xff] %v2328
          %2361 = vst [vmem:[%s405 + $0x58] sm:$0xff] %v2329
          %2362 = vst [vmem:[%s405 + $0x60] sm:$0xff] %v2330
          %2363 = vst [vmem:[%s405 + $0x68] sm:$0xff] %v2331
          %2364 = vst [vmem:[%s405 + $0x70] sm:$0xff] %v2332
          %2365 = vst [vmem:[%s405 + $0x78] sm:$0xff] %v2333
          %2366 = vst [vmem:[%s405 + $0x80] sm:$0xff] %v2334
          %2367 = vst [vmem:[%s405 + $0x88] sm:$0xff] %v2335
          %2368 = vst [vmem:[%s405 + $0x90] sm:$0xff] %v2336
          %2369 = vst [vmem:[%s405 + $0x98] sm:$0xff] %v2337
          %2370 = vst [vmem:[%s405 + $0xa0] sm:$0xff] %v2338
          %2371 = vst [vmem:[%s405 + $0xa8] sm:$0xff] %v2339
          %2372 = vst [vmem:[%s405 + $0xb0] sm:$0xff] %v2340
          %2373 = vst [vmem:[%s405 + $0xb8] sm:$0xff] %v2341
          %2374 = vst [vmem:[%s405 + $0xc0] sm:$0xff] %v2342
          %2375 = vst [vmem:[%s405 + $0xc8] sm:$0xff] %v2343
          %2376 = vst [vmem:[%s405 + $0xd0] sm:$0xff] %v2344
          %2377 = vst [vmem:[%s405 + $0xd8] sm:$0xff] %v2345
          %2378 = vst [vmem:[%s405 + $0xe0] sm:$0xff] %v2346
          %2379 = vst [vmem:[%s405 + $0xe8] sm:$0xff] %v2347
          %2380 = vst [vmem:[%s405 + $0xf0] sm:$0xff] %v2348
          %2381 = vst [vmem:[%s405 + $0xf8] sm:$0xff] %v2349
        $region72: #{tpu_custom_call.1} parent=47 // pred_fallthru
          _
        %s2382 = sand.u32 %s215, 1
        %s2383 = scalar_lea.sflag [#allocation5], %s2382
        %s2384 = sand.u32 %s215, 1
        %s2385 = smul.addr %s2384, 256
        %s2386 = scalar_lea.vmem [#allocation11], %s2385
        // Predicated region
        $region73: #{tpu_custom_call.1} parent=47 // pred_check
          %p2387 = pneg %p225
        $region74: #{tpu_custom_call.1} parent=47 // pred_check_branch
          %2389 = sbr.rel (%p2387) target = $region76
        $region75: #{tpu_custom_call.1} parent=47 // pred_region
          %s2390 = smul.u32 32, %s30
          %s2392 = ssub.s32 4096, 4096
          %2393 = vsyncadd %s2383, %s2392
          %s2394 = smul.addr %s2390, 128
          %s2395 = scalar_lea.hbm %s7, %s2394
          %s2396 = sshll.u32 %s2386, 4
          %s2397 = int_to_ptr.vmem [resolvable:$true] %s2396
          %2402 = dma.vmem_to_hbm [thread:$0]  %s2397, 4096, %s2395, %s2383, 128, 128, 8
        $region76: #{tpu_custom_call.1} parent=47 // pred_fallthru
          _
      $region48: #{tpu_custom_call.1} parent=5 // pred_fallthru
        _
      %p2403 = scmp.le.s32.totalorder 2, %s21
      // Predicated region
      $region77: #{tpu_custom_call.1} parent=5 // pred_check
        %p2404 = pneg %p2403
      $region78: #{tpu_custom_call.1} parent=5 // pred_check_branch
        %2406 = sbr.rel (%p2404) target = $region80
      $region79: #{tpu_custom_call.1} parent=5 // pred_region
        %s2407 = ssub.s32 %s21, 2
        // Predicated region
        $region81: #{tpu_custom_call.1} parent=79 // pred_check
          %p2408 = pneg %p231
        $region82: #{tpu_custom_call.1} parent=79 // pred_check_branch
          %2410 = sbr.rel (%p2408) target = $region84
        $region83: #{tpu_custom_call.1} parent=79 // pred_region
          %s2411 = sand.u32 %s216, 1
          %s2412 = scalar_lea.sflag [#allocation5], %s2411
          %s2413 = sand.u32 %s216, 1
          %s2414 = smul.addr %s2413, 256
          %s2415 = scalar_lea.vmem [#allocation11], %s2414
          %2416 = dma.done %s2412, 4096
        $region84: #{tpu_custom_call.1} parent=79 // pred_fallthru
          _
      $region80: #{tpu_custom_call.1} parent=5 // pred_fallthru
        _
    $region6: #{tpu_custom_call.1} parent=1 // loop_footer
      %s25 = sadd.s32 1, %s21
    $region7: #{tpu_custom_call.1} parent=1 // loop_footer_branch
      %20 = sbr.rel target = $region3
    $region8: #{tpu_custom_call.1} parent=1 // loop_exit
      _
    %2417 = vsyncpa [#allocation4], 1
    %s2418 = scalar_lea.sflag [#allocation4], 1
    %2419 = vsyncpa %s2418, 1
    %2420 = vsyncpa [#allocation7], 1
    %s2421 = scalar_lea.sflag [#allocation7], 1
    %2422 = vsyncpa %s2421, 1
    %2423 = vsyncpa [#allocation10], 1
    %2424 = vsyncpa [#allocation5], 1
    %s2425 = scalar_lea.sflag [#allocation5], 1
    %2426 = vsyncpa %s2425, 1

</llo_original>
